<compile_context>
chip_gen: v5e
topology: v5e:2x2
jax: 0.10.0
libtpu: 0.0.40
codegen_flags: <defaults>
</compile_context>

<pallas_src>
import functools

import jax
import jax.numpy as jnp
from jax.experimental import pallas as pl
from jax.experimental.pallas import tpu as pltpu


def _round_up(x, m):
    return ((x + m - 1) // m) * m


def _cdiv(a, b):
    return (a + b - 1) // b


# ----------------------------- Pallas kernel -------------------------------

def _sep_kernel(x_ref, wenc_ref, w1_ref, b1_ref, w2_ref, b2_ref, wdec_ref,
                o_ref, *, n_src):
    # x_ref : (L, TM)  f32   one column per (b, c, frame)
    # wenc_ref (N, L), w1_ref (H, N), w2_ref (S*N, H), wdec_ref (S*L, S*N): bf16
    # b1_ref (H, 1), b2_ref (S*N, 1): f32
    # o_ref : (S*L, TM) f32  decoded frames, sources stacked along sublanes
    bf16 = jnp.bfloat16
    xT = x_ref[...]                                                    # (L, TM)

    # Encoder: Conv1d(1, N, kernel=L, stride=L) + ReLU  ==  W_enc^T @ frames^T
    w = jnp.maximum(
        jnp.dot(wenc_ref[...], xT.astype(bf16),
                preferred_element_type=jnp.float32), 0.0)              # (N, TM)

    # Mask estimator: two pointwise (1x1) conv layers (ReLU, then sigmoid).
    h = jnp.maximum(
        jnp.dot(w1_ref[...], w.astype(bf16),
                preferred_element_type=jnp.float32) + b1_ref[...], 0.0)  # (H, TM)
    masks = jax.nn.sigmoid(
        jnp.dot(w2_ref[...], h.astype(bf16),
                preferred_element_type=jnp.float32) + b2_ref[...])       # (S*N, TM)

    # Per-source masking stacked along SUBLANES -> one fused block-diagonal
    # decoder matmul (ConvTranspose1d with stride == kernel).
    masked = jnp.concatenate([w] * n_src, axis=0) * masks              # (S*N, TM)
    o_ref[...] = jnp.dot(wdec_ref[...], masked.astype(bf16),
                         preferred_element_type=jnp.float32)           # (S*L, TM)


# ------------------------------- wrapper ------------------------------------

@functools.partial(jax.jit, static_argnames=("frame_len",))
def multichannel_sep(x, params, *, frame_len):
    """x: (B, C, T) float32 -> (B, n_src, C, T) float32."""
    B, C, T = x.shape
    L = frame_len
    assert T % L == 0, "T must be a multiple of the encoder frame length"
    F = T // L

    W_enc = params["W_enc"]            # (L, N)
    W1 = params["W1"]                  # (N, H)
    b1 = params["b1"]                  # (H,)
    W2 = params["W2"]                  # (H, S*N)
    b2 = params["b2"]                  # (S*N,)
    W_dec = params["W_dec"]            # (N, L)

    N = W_enc.shape[1]
    H = W1.shape[1]
    S = W2.shape[1] // N               # n_src (static: derived from shapes)

    # ---- flatten (B, C, F) into one row axis; pick a large lane-sized tile ----
    R = B * C * F
    TM_TARGET = 4096                               # well under VMEM on every gen
    # Cap so n_tiles >= 2 (keeps both v7x TensorCores busy), multiple of 128.
    TM = min(TM_TARGET, max(128, _round_up(_cdiv(R, 2), 128)))
    R_pad = _round_up(R, TM)
    n_tiles = R_pad // TM

    # Frames, feature-major: x_k[l, bc*F + f] = x[b, c, f*L + l]
    x_k = x.reshape(B * C, F, L).transpose(2, 0, 1).reshape(L, R)
    if R_pad > R:
        x_k = jnp.pad(x_k, ((0, 0), (0, R_pad - R)))

    # Feature-major weights, pre-cast to bf16 once (weights are DMA'd once:
    # constant index maps).  Biases stay f32 (added post-matmul in f32).
    bf16 = jnp.bfloat16
    WencT = W_enc.T.astype(bf16)                       # (N, L)
    W1T = W1.T.astype(bf16)                            # (H, N)
    b1c = b1.reshape(-1, 1).astype(jnp.float32)        # (H, 1)
    W2T = W2.T.astype(bf16)                            # (S*N, H)
    b2c = b2.reshape(-1, 1).astype(jnp.float32)        # (S*N, 1)
    # Block-diagonal decoder: (S*L, S*N) with W_dec^T on the diagonal blocks.
    Wdec_big = jnp.kron(jnp.eye(S, dtype=jnp.float32), W_dec.T).astype(bf16)

    flops = 2 * R_pad * (L * N + N * H + H * (S * N) + (S * N) * (S * L))
    bytes_accessed = (4 * L * R_pad                      # input frames (f32)
                      + 4 * S * L * R_pad                # output (f32)
                      + 2 * (N * L + H * N + S * N * H + S * L * S * N)  # bf16 weights
                      + 4 * (H + S * N))                 # biases
    transcendentals = R_pad * S * N                      # sigmoid

    out_k = pl.pallas_call(
        functools.partial(_sep_kernel, n_src=S),
        out_shape=jax.ShapeDtypeStruct((S * L, R_pad), jnp.float32),
        grid=(n_tiles,),
        in_specs=[
            pl.BlockSpec((L, TM), lambda i: (0, i)),
            pl.BlockSpec(WencT.shape, lambda i: (0, 0)),
            pl.BlockSpec(W1T.shape, lambda i: (0, 0)),
            pl.BlockSpec(b1c.shape, lambda i: (0, 0)),
            pl.BlockSpec(W2T.shape, lambda i: (0, 0)),
            pl.BlockSpec(b2c.shape, lambda i: (0, 0)),
            pl.BlockSpec(Wdec_big.shape, lambda i: (0, 0)),
        ],
        out_specs=pl.BlockSpec((S * L, TM), lambda i: (0, i)),
        compiler_params=pltpu.CompilerParams(
            dimension_semantics=("parallel",)),
        cost_estimate=pl.CostEstimate(
            flops=int(flops),
            transcendentals=int(transcendentals),
            bytes_accessed=int(bytes_accessed)),
    )(x_k, WencT, W1T, b1c, W2T, b2c, Wdec_big)

    # Unscramble in plain JAX (layout plumbing, not compute):
    # out_k[s*L + l, r] = y(source s, row r, sample l),  r = (b*C + c)*F + f
    y = out_k.reshape(S, L, R_pad)[:, :, :R]              # (S, L, R)
    y = y.reshape(S, L, B, C, F).transpose(2, 0, 3, 4, 1)  # (B, S, C, F, L)
    return y.reshape(B, S, C, T)                           # torch.cat(dim=2) layout


# ------------------------- pure-JAX reference -------------------------------

def reference(x, params, *, frame_len):
    B, C, T = x.shape
    L = frame_len
    F = T // L
    N = params["W_enc"].shape[1]
    S = params["W2"].shape[1] // N
    bf = lambda a: a.astype(jnp.bfloat16)

    frames = x.reshape(B, C, F, L)
    w = jax.nn.relu(jnp.einsum("bcfl,ln->bcfn", bf(frames), bf(params["W_enc"]),
                               preferred_element_type=jnp.float32))
    h = jax.nn.relu(jnp.einsum("bcfn,nh->bcfh", bf(w), bf(params["W1"]),
                               preferred_element_type=jnp.float32) + params["b1"])
    m = jax.nn.sigmoid(jnp.einsum("bcfh,hm->bcfm", bf(h), bf(params["W2"]),
                                  preferred_element_type=jnp.float32) + params["b2"])
    m = m.reshape(B, C, F, S, N).transpose(0, 1, 3, 2, 4)      # (B, C, S, F, N)
    wm = w[:, :, None] * m                                     # (B, C, S, F, N)
    y = jnp.einsum("bcsfn,nl->bcsfl", bf(wm), bf(params["W_dec"]),
                   preferred_element_type=jnp.float32)
    return y.reshape(B, C, S, T).transpose(0, 2, 1, 3)


# --------------------------------- main --------------------------------------

def make_params(key, *, L, N, H, n_src):
    ks = jax.random.split(key, 6)
    scale = 0.1
    return {
        "W_enc": scale * jax.random.normal(ks[0], (L, N), jnp.float32),
        "W1":    scale * jax.random.normal(ks[1], (N, H), jnp.float32),
        "b1":    scale * jax.random.normal(ks[2], (H,), jnp.float32),
        "W2":    scale * jax.random.normal(ks[3], (H, n_src * N), jnp.float32),
        "b2":    scale * jax.random.normal(ks[4], (n_src * N,), jnp.float32),
        "W_dec": scale * jax.random.normal(ks[5], (N, L), jnp.float32),
    }


if __name__ == "__main__":
    # small shapes consistent with (B, C, T) multichannel audio
    B, C, T = 2, 4, 1600         # batch, mics, time samples (0.2 s @ 8 kHz)
    L, N, H = 16, 32, 32         # encoder frame len, latent dim, masker hidden
    n_src = 2                    # number of separated sources

    root = jax.random.PRNGKey(0)
    kx, kp = jax.random.split(root)
    x = jax.random.normal(kx, (B, C, T), jnp.float32)
    params = make_params(kp, L=L, N=N, H=H, n_src=n_src)

    out = multichannel_sep(x, params, frame_len=L)
    out = jax.block_until_ready(out)

    assert out.shape == (B, n_src, C, T), out.shape

    ref = reference(x, params, frame_len=L)
    max_err = float(jnp.max(jnp.abs(out - ref)))
    assert jnp.allclose(out, ref, atol=1e-3, rtol=1e-3), f"mismatch vs reference: {max_err}"

    print("KERNEL_OK")
</pallas_src>

<mosaic_0001>
module attributes {stable_mosaic.version = 11 : i64} {
  func.func @_sep_kernel(%arg0: i32, %arg1: memref<16x512xf32, #tpu.memory_space<vmem>>, %arg2: memref<32x16xbf16, #tpu.memory_space<vmem>>, %arg3: memref<32x32xbf16, #tpu.memory_space<vmem>>, %arg4: memref<32x1xf32, #tpu.memory_space<vmem>>, %arg5: memref<64x32xbf16, #tpu.memory_space<vmem>>, %arg6: memref<64x1xf32, #tpu.memory_space<vmem>>, %arg7: memref<32x64xbf16, #tpu.memory_space<vmem>>, %arg8: memref<32x512xf32, #tpu.memory_space<vmem>>) attributes {dimension_semantics = [#tpu.dimension_semantics<parallel>], iteration_bounds = array<i64: 2>, scalar_prefetch = 0 : i64, scratch_operands = 0 : i64, tpu.core_type = #tpu.core_type<tc>, window_params = [{transform_indices = @transform_0, window_bounds = array<i64: 16, 512>}, {pipeline_mode = #tpu.pipeline_mode<synchronous>, transform_indices = @transform_1, window_bounds = array<i64: 32, 16>}, {pipeline_mode = #tpu.pipeline_mode<synchronous>, transform_indices = @transform_2, window_bounds = array<i64: 32, 32>}, {pipeline_mode = #tpu.pipeline_mode<synchronous>, transform_indices = @transform_3, window_bounds = array<i64: 32, 1>}, {pipeline_mode = #tpu.pipeline_mode<synchronous>, transform_indices = @transform_4, window_bounds = array<i64: 64, 32>}, {pipeline_mode = #tpu.pipeline_mode<synchronous>, transform_indices = @transform_5, window_bounds = array<i64: 64, 1>}, {pipeline_mode = #tpu.pipeline_mode<synchronous>, transform_indices = @transform_6, window_bounds = array<i64: 32, 64>}, {transform_indices = @transform_7, window_bounds = array<i64: 32, 512>}]} {
    %c0 = arith.constant 0 : index
    %c0_0 = arith.constant 0 : index
    %0 = vector.load %arg1[%c0, %c0_0] : memref<16x512xf32, #tpu.memory_space<vmem>>, vector<16x512xf32>
    %c0_1 = arith.constant 0 : index
    %c0_2 = arith.constant 0 : index
    %1 = vector.load %arg2[%c0_1, %c0_2] : memref<32x16xbf16, #tpu.memory_space<vmem>>, vector<32x16xbf16>
    %2 = arith.truncf %0 : vector<16x512xf32> to vector<16x512xbf16>
    %cst = arith.constant dense<0.000000e+00> : vector<32x512xf32>
    %3 = tpu.matmul %1, %2, %cst {dimension_numbers = #tpu.dot_dimension_numbers<[1], [0], [0], [1], [0, 0, 1, 1], [], []>} : vector<32x16xbf16>, vector<16x512xbf16>, vector<32x512xf32> -> vector<32x512xf32>
    %cst_3 = arith.constant 0.000000e+00 : f32
    %4 = vector.broadcast %cst_3 : f32 to vector<32x512xf32>
    %5 = arith.maximumf %3, %4 : vector<32x512xf32>
    %c0_4 = arith.constant 0 : index
    %c0_5 = arith.constant 0 : index
    %6 = vector.load %arg3[%c0_4, %c0_5] : memref<32x32xbf16, #tpu.memory_space<vmem>>, vector<32x32xbf16>
    %7 = arith.truncf %5 : vector<32x512xf32> to vector<32x512xbf16>
    %cst_6 = arith.constant dense<0.000000e+00> : vector<32x512xf32>
    %8 = tpu.matmul %6, %7, %cst_6 {dimension_numbers = #tpu.dot_dimension_numbers<[1], [0], [0], [1], [0, 0, 1, 1], [], []>} : vector<32x32xbf16>, vector<32x512xbf16>, vector<32x512xf32> -> vector<32x512xf32>
    %c0_7 = arith.constant 0 : index
    %c0_8 = arith.constant 0 : index
    %9 = vector.load %arg4[%c0_7, %c0_8] : memref<32x1xf32, #tpu.memory_space<vmem>>, vector<32x1xf32>
    %10 = vector.broadcast %9 : vector<32x1xf32> to vector<32x512xf32>
    %11 = arith.addf %8, %10 : vector<32x512xf32>
    %cst_9 = arith.constant 0.000000e+00 : f32
    %12 = vector.broadcast %cst_9 : f32 to vector<32x512xf32>
    %13 = arith.maximumf %11, %12 : vector<32x512xf32>
    %c0_10 = arith.constant 0 : index
    %c0_11 = arith.constant 0 : index
    %14 = vector.load %arg5[%c0_10, %c0_11] : memref<64x32xbf16, #tpu.memory_space<vmem>>, vector<64x32xbf16>
    %15 = arith.truncf %13 : vector<32x512xf32> to vector<32x512xbf16>
    %cst_12 = arith.constant dense<0.000000e+00> : vector<64x512xf32>
    %16 = tpu.matmul %14, %15, %cst_12 {dimension_numbers = #tpu.dot_dimension_numbers<[1], [0], [0], [1], [0, 0, 1, 1], [], []>} : vector<64x32xbf16>, vector<32x512xbf16>, vector<64x512xf32> -> vector<64x512xf32>
    %c0_13 = arith.constant 0 : index
    %c0_14 = arith.constant 0 : index
    %17 = vector.load %arg6[%c0_13, %c0_14] : memref<64x1xf32, #tpu.memory_space<vmem>>, vector<64x1xf32>
    %18 = vector.broadcast %17 : vector<64x1xf32> to vector<64x512xf32>
    %19 = arith.addf %16, %18 : vector<64x512xf32>
    %20 = arith.negf %19 : vector<64x512xf32>
    %21 = math.exp %20 : vector<64x512xf32>
    %cst_15 = arith.constant 1.000000e+00 : f32
    %22 = vector.broadcast %cst_15 : f32 to vector<64x512xf32>
    %23 = arith.addf %22, %21 : vector<64x512xf32>
    %24 = arith.divf %22, %23 : vector<64x512xf32>
    %25 = tpu.concatenate %5, %5 in 0 : vector<32x512xf32>, vector<32x512xf32> -> vector<64x512xf32>
    %26 = arith.mulf %25, %24 : vector<64x512xf32>
    %c0_16 = arith.constant 0 : index
    %c0_17 = arith.constant 0 : index
    %27 = vector.load %arg7[%c0_16, %c0_17] : memref<32x64xbf16, #tpu.memory_space<vmem>>, vector<32x64xbf16>
    %28 = arith.truncf %26 : vector<64x512xf32> to vector<64x512xbf16>
    %cst_18 = arith.constant dense<0.000000e+00> : vector<32x512xf32>
    %29 = tpu.matmul %27, %28, %cst_18 {dimension_numbers = #tpu.dot_dimension_numbers<[1], [0], [0], [1], [0, 0, 1, 1], [], []>} : vector<32x64xbf16>, vector<64x512xbf16>, vector<32x512xf32> -> vector<32x512xf32>
    %c0_19 = arith.constant 0 : index
    %c0_20 = arith.constant 0 : index
    %30 = vector.load %arg8[%c0_19, %c0_20] : memref<32x512xf32, #tpu.memory_space<vmem>>, vector<32x512xf32>
    tpu.vector_store %arg8[%c0_19, %c0_20], %29 {strides = array<i32>} : memref<32x512xf32, #tpu.memory_space<vmem>>, vector<32x512xf32>,
    return
  }
  func.func @transform_0(%arg0: i32) -> (i32, i32) {
    %c0_i32 = arith.constant 0 : i32
    %c0_i32_0 = arith.constant 0 : i32
    return %c0_i32, %arg0 : i32, i32
  }
  func.func @transform_1(%arg0: i32) -> (i32, i32) {
    %c0_i32 = arith.constant 0 : i32
    %c0_i32_0 = arith.constant 0 : i32
    %c0_i32_1 = arith.constant 0 : i32
    return %c0_i32, %c0_i32_0 : i32, i32
  }
  func.func @transform_2(%arg0: i32) -> (i32, i32) {
    %c0_i32 = arith.constant 0 : i32
    %c0_i32_0 = arith.constant 0 : i32
    %c0_i32_1 = arith.constant 0 : i32
    return %c0_i32, %c0_i32_0 : i32, i32
  }
  func.func @transform_3(%arg0: i32) -> (i32, i32) {
    %c0_i32 = arith.constant 0 : i32
    %c0_i32_0 = arith.constant 0 : i32
    %c0_i32_1 = arith.constant 0 : i32
    return %c0_i32, %c0_i32_0 : i32, i32
  }
  func.func @transform_4(%arg0: i32) -> (i32, i32) {
    %c0_i32 = arith.constant 0 : i32
    %c0_i32_0 = arith.constant 0 : i32
    %c0_i32_1 = arith.constant 0 : i32
    return %c0_i32, %c0_i32_0 : i32, i32
  }
  func.func @transform_5(%arg0: i32) -> (i32, i32) {
    %c0_i32 = arith.constant 0 : i32
    %c0_i32_0 = arith.constant 0 : i32
    %c0_i32_1 = arith.constant 0 : i32
    return %c0_i32, %c0_i32_0 : i32, i32
  }
  func.func @transform_6(%arg0: i32) -> (i32, i32) {
    %c0_i32 = arith.constant 0 : i32
    %c0_i32_0 = arith.constant 0 : i32
    %c0_i32_1 = arith.constant 0 : i32
    return %c0_i32, %c0_i32_0 : i32, i32
  }
  func.func @transform_7(%arg0: i32) -> (i32, i32) {
    %c0_i32 = arith.constant 0 : i32
    %c0_i32_0 = arith.constant 0 : i32
    return %c0_i32, %arg0 : i32, i32
  }
}

</mosaic_0001>

<llo_original>
// kernel: multichannel_sep.1
$region0: #{multichannel_sep.1}
  #allocation0 [shape = 'u32[]', space=smem, size = 0x4, offset = 0x4, fixed_abs, tag = 'smem constant byte address 0x4 - core index']
  #allocation1 [shape = 'u32[72,128]{1,0:T(1,128)}', space=vmem, size = 0x9000, scoped, tag = 'internal scratch']
  %s0 = inlined_call_operand.vmem [shape: f32[16,1024], index: 0, kind: input, shape index: {}]
  %s1 = inlined_call_operand.vmem [shape: bf16[32,16], index: 1, kind: input, shape index: {}]
  %s2 = inlined_call_operand.vmem [shape: bf16[32,32], index: 2, kind: input, shape index: {}]
  %s3 = inlined_call_operand.vmem [shape: f32[32,1], index: 3, kind: input, shape index: {}]
  %s4 = inlined_call_operand.vmem [shape: bf16[64,32], index: 4, kind: input, shape index: {}]
  %s5 = inlined_call_operand.vmem [shape: f32[64,1], index: 5, kind: input, shape index: {}]
  %s6 = inlined_call_operand.vmem [shape: bf16[32,64], index: 6, kind: input, shape index: {}]
  %s7 = inlined_call_operand.vmem [shape: f32[32,1024], index: 7, kind: output, shape index: {}]
  %s8 = sld [smem:[#allocation0]]
  $region103: #{multichannel_sep.1} parent=0
    _
  %s10 = ssub.s32 1, %s8
  %s11 = scalar_select 0, %s10, %s8
  $region1: #{multichannel_sep.1} parent=0
    #allocation2 [shape = 'u8[65536]{0}', space=vmem, size = 0x10000, scoped, tag = 'input window, operand 0']
    #allocation3 [shape = 'u8[131072]{0}', space=vmem, size = 0x20000, scoped, tag = 'output window, operand 0']
    loop: start=0, step=1, limit=4
    $region2: #{multichannel_sep.1} parent=1 // loop_pre_header
      _
    $region3: #{multichannel_sep.1} parent=1 // loop_header
      %s13 = sphi 0, %s17
      %p14 = scmp.ge.s32.totalorder %s13, 4
      %s23 = sphi 0, %s25
      %s26 = sphi 0, %s23
      %s27 = sphi 0, %s26
      %s43 = sphi 0, %s27
      %s47 = sphi 0, %s47
      %s49 = sphi 0, %s47
      %s50 = sphi 0, %s49
      %s64 = sphi 0, %s50
      %s68 = sphi 0, %s68
      %s70 = sphi 0, %s68
      %s71 = sphi 0, %s70
      %s85 = sphi 0, %s71
      %s89 = sphi 0, %s89
      %s91 = sphi 0, %s89
      %s92 = sphi 0, %s91
      %s106 = sphi 0, %s92
      %s110 = sphi 0, %s110
      %s112 = sphi 0, %s110
      %s113 = sphi 0, %s112
      %s127 = sphi 0, %s113
      %s131 = sphi 0, %s131
      %s133 = sphi 0, %s131
      %s134 = sphi 0, %s133
      %s148 = sphi 0, %s134
      %s152 = sphi 0, %s152
      %s154 = sphi 0, %s152
      %s155 = sphi 0, %s154
      %s169 = sphi 0, %s155
      %s175 = sphi 0, %s177
      %s178 = sphi 0, %s175
      %s179 = sphi 0, %s178
      %s195 = sphi 0, %s179
    $region4: #{multichannel_sep.1} parent=1 // loop_header_branch
      %16 = sbr.rel (%p14) target = $region8
    $region5: #{multichannel_sep.1} parent=1 // loop_body
      %s18 = ssub.s32 %s13, 1
      %s19 = ssub.s32 %s13, 2
      %s20 = sadd.s32 %s13, 1
      %s21 = ssub.s32 %s13, %s20
      %p22 = scmp.eq.s32.totalorder %s21, 0
      %s24 = sadd.s32 %s23, 1
      %s25 = scalar_select %p22, %s23, %s24
      %p28 = pneg %p22
      %p29 = scmp.eq.s32.totalorder %s13, 1
      %p30 = por %p28, %p29
      %p31 = scmp.ne.s32.totalorder %s23, %s26
      %p32 = scmp.eq.s32.totalorder %s13, 0
      %p33 = por %p31, %p32
      %p34 = scmp.ne.s32.totalorder %s23, %s26
      %p35 = scmp.eq.s32.totalorder %s18, 1
      %p36 = por %p34, %p35
      %p37 = scmp.ne.s32.totalorder %s26, %s27
      %p38 = scmp.eq.s32.totalorder %s18, 0
      %p39 = por %p37, %p38
      %p40 = scmp.ne.s32.totalorder %s26, %s27
      %p41 = scmp.eq.s32.totalorder %s19, 1
      %p42 = por %p40, %p41
      %p44 = scmp.ne.s32.totalorder %s27, %s43
      %p45 = scmp.eq.s32.totalorder %s19, 0
      %p46 = por %p44, %p45
      %s48 = sadd.s32 %s47, 1
      %p51 = scmp.eq.s32.totalorder %s13, 1
      %p52 = scmp.ne.s32.totalorder %s47, %s49
      %p53 = scmp.eq.s32.totalorder %s13, 0
      %p54 = por %p52, %p53
      %p55 = scmp.ne.s32.totalorder %s47, %s49
      %p56 = scmp.eq.s32.totalorder %s18, 1
      %p57 = por %p55, %p56
      %p58 = scmp.ne.s32.totalorder %s49, %s50
      %p59 = scmp.eq.s32.totalorder %s18, 0
      %p60 = por %p58, %p59
      %p61 = scmp.ne.s32.totalorder %s49, %s50
      %p62 = scmp.eq.s32.totalorder %s19, 1
      %p63 = por %p61, %p62
      %p65 = scmp.ne.s32.totalorder %s50, %s64
      %p66 = scmp.eq.s32.totalorder %s19, 0
      %p67 = por %p65, %p66
      %s69 = sadd.s32 %s68, 1
      %p72 = scmp.eq.s32.totalorder %s13, 1
      %p73 = scmp.ne.s32.totalorder %s68, %s70
      %p74 = scmp.eq.s32.totalorder %s13, 0
      %p75 = por %p73, %p74
      %p76 = scmp.ne.s32.totalorder %s68, %s70
      %p77 = scmp.eq.s32.totalorder %s18, 1
      %p78 = por %p76, %p77
      %p79 = scmp.ne.s32.totalorder %s70, %s71
      %p80 = scmp.eq.s32.totalorder %s18, 0
      %p81 = por %p79, %p80
      %p82 = scmp.ne.s32.totalorder %s70, %s71
      %p83 = scmp.eq.s32.totalorder %s19, 1
      %p84 = por %p82, %p83
      %p86 = scmp.ne.s32.totalorder %s71, %s85
      %p87 = scmp.eq.s32.totalorder %s19, 0
      %p88 = por %p86, %p87
      %s90 = sadd.s32 %s89, 1
      %p93 = scmp.eq.s32.totalorder %s13, 1
      %p94 = scmp.ne.s32.totalorder %s89, %s91
      %p95 = scmp.eq.s32.totalorder %s13, 0
      %p96 = por %p94, %p95
      %p97 = scmp.ne.s32.totalorder %s89, %s91
      %p98 = scmp.eq.s32.totalorder %s18, 1
      %p99 = por %p97, %p98
      %p100 = scmp.ne.s32.totalorder %s91, %s92
      %p101 = scmp.eq.s32.totalorder %s18, 0
      %p102 = por %p100, %p101
      %p103 = scmp.ne.s32.totalorder %s91, %s92
      %p104 = scmp.eq.s32.totalorder %s19, 1
      %p105 = por %p103, %p104
      %p107 = scmp.ne.s32.totalorder %s92, %s106
      %p108 = scmp.eq.s32.totalorder %s19, 0
      %p109 = por %p107, %p108
      %s111 = sadd.s32 %s110, 1
      %p114 = scmp.eq.s32.totalorder %s13, 1
      %p115 = scmp.ne.s32.totalorder %s110, %s112
      %p116 = scmp.eq.s32.totalorder %s13, 0
      %p117 = por %p115, %p116
      %p118 = scmp.ne.s32.totalorder %s110, %s112
      %p119 = scmp.eq.s32.totalorder %s18, 1
      %p120 = por %p118, %p119
      %p121 = scmp.ne.s32.totalorder %s112, %s113
      %p122 = scmp.eq.s32.totalorder %s18, 0
      %p123 = por %p121, %p122
      %p124 = scmp.ne.s32.totalorder %s112, %s113
      %p125 = scmp.eq.s32.totalorder %s19, 1
      %p126 = por %p124, %p125
      %p128 = scmp.ne.s32.totalorder %s113, %s127
      %p129 = scmp.eq.s32.totalorder %s19, 0
      %p130 = por %p128, %p129
      %s132 = sadd.s32 %s131, 1
      %p135 = scmp.eq.s32.totalorder %s13, 1
      %p136 = scmp.ne.s32.totalorder %s131, %s133
      %p137 = scmp.eq.s32.totalorder %s13, 0
      %p138 = por %p136, %p137
      %p139 = scmp.ne.s32.totalorder %s131, %s133
      %p140 = scmp.eq.s32.totalorder %s18, 1
      %p141 = por %p139, %p140
      %p142 = scmp.ne.s32.totalorder %s133, %s134
      %p143 = scmp.eq.s32.totalorder %s18, 0
      %p144 = por %p142, %p143
      %p145 = scmp.ne.s32.totalorder %s133, %s134
      %p146 = scmp.eq.s32.totalorder %s19, 1
      %p147 = por %p145, %p146
      %p149 = scmp.ne.s32.totalorder %s134, %s148
      %p150 = scmp.eq.s32.totalorder %s19, 0
      %p151 = por %p149, %p150
      %s153 = sadd.s32 %s152, 1
      %p156 = scmp.eq.s32.totalorder %s13, 1
      %p157 = scmp.ne.s32.totalorder %s152, %s154
      %p158 = scmp.eq.s32.totalorder %s13, 0
      %p159 = por %p157, %p158
      %p160 = scmp.ne.s32.totalorder %s152, %s154
      %p161 = scmp.eq.s32.totalorder %s18, 1
      %p162 = por %p160, %p161
      %p163 = scmp.ne.s32.totalorder %s154, %s155
      %p164 = scmp.eq.s32.totalorder %s18, 0
      %p165 = por %p163, %p164
      %p166 = scmp.ne.s32.totalorder %s154, %s155
      %p167 = scmp.eq.s32.totalorder %s19, 1
      %p168 = por %p166, %p167
      %p170 = scmp.ne.s32.totalorder %s155, %s169
      %p171 = scmp.eq.s32.totalorder %s19, 0
      %p172 = por %p170, %p171
      %s173 = ssub.s32 %s13, %s20
      %p174 = scmp.eq.s32.totalorder %s173, 0
      %s176 = sadd.s32 %s175, 1
      %s177 = scalar_select %p174, %s175, %s176
      %p180 = pneg %p174
      %p181 = scmp.eq.s32.totalorder %s13, 1
      %p182 = por %p180, %p181
      %p183 = scmp.ne.s32.totalorder %s175, %s178
      %p184 = scmp.eq.s32.totalorder %s13, 0
      %p185 = por %p183, %p184
      %p186 = scmp.ne.s32.totalorder %s175, %s178
      %p187 = scmp.eq.s32.totalorder %s18, 1
      %p188 = por %p186, %p187
      %p189 = scmp.ne.s32.totalorder %s178, %s179
      %p190 = scmp.eq.s32.totalorder %s18, 0
      %p191 = por %p189, %p190
      %p192 = scmp.ne.s32.totalorder %s178, %s179
      %p193 = scmp.eq.s32.totalorder %s19, 1
      %p194 = por %p192, %p193
      %p196 = scmp.ne.s32.totalorder %s179, %s195
      %p197 = scmp.eq.s32.totalorder %s19, 0
      %p198 = por %p196, %p197
      %p199 = scmp.le.s32.totalorder 1, %s13
      %p200 = scmp.lt.s32.totalorder %s13, 3
      %p201 = pnand %p199, %p200
      %p202 = pneg %p201
      // Predicated region
      $region9: #{multichannel_sep.1} parent=5 // pred_check
        _
      $region10: #{multichannel_sep.1} parent=5 // pred_check_branch
        %204 = sbr.rel (%p201) target = $region12
      $region11: #{multichannel_sep.1} parent=5 // pred_region
        %s205 = ssub.s32 %s13, 1
        // Predicated region
        $region13: #{multichannel_sep.1} parent=11 // pred_check
          %p206 = pneg %p60
        $region14: #{multichannel_sep.1} parent=11 // pred_check_branch
          %208 = sbr.rel (%p206) target = $region16
        $region15: #{multichannel_sep.1} parent=11 // pred_region
          _
        $region16: #{multichannel_sep.1} parent=11 // pred_fallthru
          _
        // Predicated region
        $region17: #{multichannel_sep.1} parent=11 // pred_check
          %p209 = pneg %p81
        $region18: #{multichannel_sep.1} parent=11 // pred_check_branch
          %211 = sbr.rel (%p209) target = $region20
        $region19: #{multichannel_sep.1} parent=11 // pred_region
          _
        $region20: #{multichannel_sep.1} parent=11 // pred_fallthru
          _
        // Predicated region
        $region21: #{multichannel_sep.1} parent=11 // pred_check
          %p212 = pneg %p102
        $region22: #{multichannel_sep.1} parent=11 // pred_check_branch
          %214 = sbr.rel (%p212) target = $region24
        $region23: #{multichannel_sep.1} parent=11 // pred_region
          _
        $region24: #{multichannel_sep.1} parent=11 // pred_fallthru
          _
        // Predicated region
        $region25: #{multichannel_sep.1} parent=11 // pred_check
          %p215 = pneg %p123
        $region26: #{multichannel_sep.1} parent=11 // pred_check_branch
          %217 = sbr.rel (%p215) target = $region28
        $region27: #{multichannel_sep.1} parent=11 // pred_region
          _
        $region28: #{multichannel_sep.1} parent=11 // pred_fallthru
          _
        // Predicated region
        $region29: #{multichannel_sep.1} parent=11 // pred_check
          %p218 = pneg %p144
        $region30: #{multichannel_sep.1} parent=11 // pred_check_branch
          %220 = sbr.rel (%p218) target = $region32
        $region31: #{multichannel_sep.1} parent=11 // pred_region
          _
        $region32: #{multichannel_sep.1} parent=11 // pred_fallthru
          _
        // Predicated region
        $region33: #{multichannel_sep.1} parent=11 // pred_check
          %p221 = pneg %p165
        $region34: #{multichannel_sep.1} parent=11 // pred_check_branch
          %223 = sbr.rel (%p221) target = $region36
        $region35: #{multichannel_sep.1} parent=11 // pred_region
          _
        $region36: #{multichannel_sep.1} parent=11 // pred_fallthru
          _
      $region12: #{multichannel_sep.1} parent=5 // pred_fallthru
        _
      %p224 = scmp.lt.s32.totalorder %s13, 2
      // Predicated region
      $region37: #{multichannel_sep.1} parent=5 // pred_check
        %p225 = pneg %p224
      $region38: #{multichannel_sep.1} parent=5 // pred_check_branch
        %227 = sbr.rel (%p225) target = $region40
      $region39: #{multichannel_sep.1} parent=5 // pred_region
        // Predicated region
        $region41: #{multichannel_sep.1} parent=39 // pred_check
          %p228 = pneg %p33
        $region42: #{multichannel_sep.1} parent=39 // pred_check_branch
          %230 = sbr.rel (%p228) target = $region44
        $region43: #{multichannel_sep.1} parent=39 // pred_region
          %s231 = sand.u32 %s23, 1
          %s232 = sand.u32 %s23, 1
          %s233 = smul.addr %s232, 64
          %s234 = scalar_lea.vmem [#allocation2], %s233
          %s235 = smul.u32 4, %s13
          %s236 = smul.addr %s235, 8
          %s237 = scalar_lea.vmem %s0, %s236
          // Predicated region
          $region45: #{multichannel_sep.1} parent=43 // pred_check
            _
          $region46: #{multichannel_sep.1} parent=43 // pred_check_branch
            %239 = sbr.rel (0) target = $region48
          $region47: #{multichannel_sep.1} parent=43 // pred_region
            // Predicated region
            $region49: #{multichannel_sep.1} parent=47 // pred_check
              _
            $region50: #{multichannel_sep.1} parent=47 // pred_check_branch
              %241 = sbr.rel (0) target = $region52
            $region51: #{multichannel_sep.1} parent=47 // pred_region
              loop: start=0, step=1, limit=1
              $region53: #{multichannel_sep.1} parent=51 // loop_pre_header
                _
              $region54: #{multichannel_sep.1} parent=51 // loop_header
                %s243 = sphi 0, %s247
                %p244 = scmp.ge.s32.totalorder %s243, 1
                %s248 = sphi %s237, %s237
                %s249 = sphi %s234, %s234
              $region55: #{multichannel_sep.1} parent=51 // loop_header_branch
                %246 = sbr.rel (%p244) target = $region59
              $region56: #{multichannel_sep.1} parent=51 // loop_body
                %v250 = vld [vmem:[%s248] sm:$0xff]
                %251 = vst [vmem:[%s249] sm:$0xff] %v250
                %v252 = vld [vmem:[%s248 + $0x8] sm:$0xff]
                %253 = vst [vmem:[%s249 + $0x8] sm:$0xff] %v252
                %v254 = vld [vmem:[%s248 + $0x10] sm:$0xff]
                %255 = vst [vmem:[%s249 + $0x10] sm:$0xff] %v254
                %v256 = vld [vmem:[%s248 + $0x18] sm:$0xff]
                %257 = vst [vmem:[%s249 + $0x18] sm:$0xff] %v256
                %v258 = vld [vmem:[%s248 + $0x40] sm:$0xff]
                %259 = vst [vmem:[%s249 + $0x20] sm:$0xff] %v258
                %v260 = vld [vmem:[%s248 + $0x48] sm:$0xff]
                %261 = vst [vmem:[%s249 + $0x28] sm:$0xff] %v260
                %v262 = vld [vmem:[%s248 + $0x50] sm:$0xff]
                %263 = vst [vmem:[%s249 + $0x30] sm:$0xff] %v262
                %v264 = vld [vmem:[%s248 + $0x58] sm:$0xff]
                %265 = vst [vmem:[%s249 + $0x38] sm:$0xff] %v264
              $region57: #{multichannel_sep.1} parent=51 // loop_footer
                %s247 = sadd.s32 1, %s243
              $region58: #{multichannel_sep.1} parent=51 // loop_footer_branch
                %242 = sbr.rel target = $region54
              $region59: #{multichannel_sep.1} parent=51 // loop_exit
                _
            $region52: #{multichannel_sep.1} parent=47 // pred_fallthru
              _
            // Predicated region
            $region60: #{multichannel_sep.1} parent=47 // pred_check
              _
            $region61: #{multichannel_sep.1} parent=47 // pred_check_branch
              %267 = sbr.rel target = $region63
            $region62: #{multichannel_sep.1} parent=47 // pred_region
              _
            $region63: #{multichannel_sep.1} parent=47 // pred_fallthru
              _
          $region48: #{multichannel_sep.1} parent=43 // pred_fallthru
            _
          %268 = vnop
        $region44: #{multichannel_sep.1} parent=39 // pred_fallthru
          _
      $region40: #{multichannel_sep.1} parent=5 // pred_fallthru
        _
      %p269 = scmp.le.s32.totalorder 1, %s13
      %p270 = scmp.lt.s32.totalorder %s13, 3
      %p271 = pnand %p269, %p270
      %p272 = pneg %p271
      // Predicated region
      $region64: #{multichannel_sep.1} parent=5 // pred_check
        _
      $region65: #{multichannel_sep.1} parent=5 // pred_check_branch
        %274 = sbr.rel (%p271) target = $region67
      $region66: #{multichannel_sep.1} parent=5 // pred_region
        %s275 = ssub.s32 %s13, 1
        %s276 = sand.u32 %s26, 1
        %s277 = sand.u32 %s26, 1
        %s278 = smul.addr %s277, 64
        %s279 = scalar_lea.vmem [#allocation2], %s278
        // Predicated region
        $region68: #{multichannel_sep.1} parent=66 // pred_check
          %p280 = pneg %p39
        $region69: #{multichannel_sep.1} parent=66 // pred_check_branch
          %282 = sbr.rel (%p280) target = $region71
        $region70: #{multichannel_sep.1} parent=66 // pred_region
          _
        $region71: #{multichannel_sep.1} parent=66 // pred_fallthru
          _
        %s283 = sand.u32 %s26, 1
        %s284 = sand.u32 %s26, 1
        %s285 = smul.addr %s284, 64
        %s286 = scalar_lea.vmem [#allocation2], %s285
        %p287 = pneg %p39
        %p288 = pneg %p36
        %p289 = pneg %p60
        %p290 = pneg %p57
        %p291 = pneg %p81
        %p292 = pneg %p78
        %p293 = pneg %p102
        %p294 = pneg %p99
        %p295 = pneg %p123
        %p296 = pneg %p120
        %p297 = pneg %p144
        %p298 = pneg %p141
        %p299 = pneg %p165
        %p300 = pneg %p162
        %p301 = pneg %p191
        %p302 = pneg %p188
        %s303 = sand.u32 %s178, 1
        %s304 = sand.u32 %s178, 1
        %s305 = smul.addr %s304, 128
        %s306 = scalar_lea.vmem [#allocation3], %s305
        %s307 = smul.u32 4, %s18
        %s308 = smul.u32 4, %s18
        %v310 = vld [vmem:[%s279] sm:$0xff]
        %v311 = vld [vmem:[%s279 + $0x8] sm:$0xff]
        %v312 = vld [vmem:[%s279 + $0x10] sm:$0xff]
        %v313 = vld [vmem:[%s279 + $0x18] sm:$0xff]
        %v314 = vld [vmem:[%s279 + $0x20] sm:$0xff]
        %v315 = vld [vmem:[%s279 + $0x28] sm:$0xff]
        %v316 = vld [vmem:[%s279 + $0x30] sm:$0xff]
        %v317 = vld [vmem:[%s279 + $0x38] sm:$0xff]
        %v318 = vld [vmem:[%s1] sm:$0xf]
        %v319 = vld [vmem:[%s1 + $0x4] sm:$0xf]
        %v320 = vld [vmem:[%s1 + $0x8] sm:$0xf]
        %v321 = vld [vmem:[%s1 + $0xc] sm:$0xf]
        %v322 = vpack.c.bf16 %v314, %v310
        %v323 = vpack.c.bf16 %v315, %v311
        %v324 = vpack.c.bf16 %v316, %v312
        %v325 = vpack.c.bf16 %v317, %v313
        %v330 = vunpack.c.l.b16 %v318
        %v331 = vunpack.c.l.b16 %v319
        %v332 = vunpack.c.l.b16 %v320
        %v333 = vunpack.c.l.b16 %v321
        %v334 = vpack.c.b16 %v331, %v330
        %v335 = vpack.c.b16 %v333, %v332
        %vm336 = vcmask 130048
        %v338 = vsel %vm336, %v334, 0
        %v341 = vsel %vm336, %v335, 0
        %343 = vmatpush.bf16.msra.mxu0 0
        %344 = vmatpush.bf16.msra.mxu0 0
        %345 = vmatpush.bf16.msra.mxu0 0
        %346 = vmatpush.bf16.msra.mxu0 0
        %347 = vmatpush.bf16.msra.mxu0 0
        %348 = vmatpush.bf16.msra.mxu0 0
        %349 = vmatpush.bf16.msra.mxu0 0
        %350 = vmatpush.bf16.msra.mxu0 %v322
        %351 = vmatmul.bf16.gmra.mxu0 %v338
        %v352 = vpop.f32.mrf.mxu0
        %v353 = vadd.f32 0.0, %v352
        %v354 = vpop.f32.mrf.mxu0
        %v355 = vadd.f32 0.0, %v354
        %356 = vmatmul.bf16.gmra.mxu0 %v341
        %v357 = vpop.f32.mrf.mxu0
        %v358 = vadd.f32 0.0, %v357
        %v359 = vpop.f32.mrf.mxu0
        %v360 = vadd.f32 0.0, %v359
        %361 = vdwg.mxu0
        %362 = vmatpush.bf16.msra.mxu0 0
        %363 = vmatpush.bf16.msra.mxu0 0
        %364 = vmatpush.bf16.msra.mxu0 0
        %365 = vmatpush.bf16.msra.mxu0 0
        %366 = vmatpush.bf16.msra.mxu0 0
        %367 = vmatpush.bf16.msra.mxu0 0
        %368 = vmatpush.bf16.msra.mxu0 0
        %369 = vmatpush.bf16.msra.mxu0 %v323
        %370 = vmatmul.bf16.gmra.mxu0 %v338
        %v371 = vpop.f32.mrf.mxu0
        %v372 = vadd.f32 0.0, %v371
        %v373 = vpop.f32.mrf.mxu0
        %v374 = vadd.f32 0.0, %v373
        %375 = vmatmul.bf16.gmra.mxu0 %v341
        %v376 = vpop.f32.mrf.mxu0
        %v377 = vadd.f32 0.0, %v376
        %v378 = vpop.f32.mrf.mxu0
        %v379 = vadd.f32 0.0, %v378
        %380 = vdwg.mxu0
        %381 = vmatpush.bf16.msra.mxu0 0
        %382 = vmatpush.bf16.msra.mxu0 0
        %383 = vmatpush.bf16.msra.mxu0 0
        %384 = vmatpush.bf16.msra.mxu0 0
        %385 = vmatpush.bf16.msra.mxu0 0
        %386 = vmatpush.bf16.msra.mxu0 0
        %387 = vmatpush.bf16.msra.mxu0 0
        %388 = vmatpush.bf16.msra.mxu0 %v324
        %389 = vmatmul.bf16.gmra.mxu0 %v338
        %v390 = vpop.f32.mrf.mxu0
        %v391 = vadd.f32 0.0, %v390
        %v392 = vpop.f32.mrf.mxu0
        %v393 = vadd.f32 0.0, %v392
        %394 = vmatmul.bf16.gmra.mxu0 %v341
        %v395 = vpop.f32.mrf.mxu0
        %v396 = vadd.f32 0.0, %v395
        %v397 = vpop.f32.mrf.mxu0
        %v398 = vadd.f32 0.0, %v397
        %399 = vdwg.mxu0
        %400 = vmatpush.bf16.msra.mxu0 0
        %401 = vmatpush.bf16.msra.mxu0 0
        %402 = vmatpush.bf16.msra.mxu0 0
        %403 = vmatpush.bf16.msra.mxu0 0
        %404 = vmatpush.bf16.msra.mxu0 0
        %405 = vmatpush.bf16.msra.mxu0 0
        %406 = vmatpush.bf16.msra.mxu0 0
        %407 = vmatpush.bf16.msra.mxu0 %v325
        %408 = vmatmul.bf16.gmra.mxu0 %v338
        %v409 = vpop.f32.mrf.mxu0
        %v410 = vadd.f32 0.0, %v409
        %v411 = vpop.f32.mrf.mxu0
        %v412 = vadd.f32 0.0, %v411
        %413 = vmatmul.bf16.gmra.mxu0 %v341
        %v414 = vpop.f32.mrf.mxu0
        %v415 = vadd.f32 0.0, %v414
        %v416 = vpop.f32.mrf.mxu0
        %v417 = vadd.f32 0.0, %v416
        %418 = vdwg.mxu0
        %v419 = vmax.f32 %v353, 0.0
        %v420 = vmax.f32 %v372, 0.0
        %v421 = vmax.f32 %v391, 0.0
        %v422 = vmax.f32 %v410, 0.0
        %v423 = vmax.f32 %v355, 0.0
        %v424 = vmax.f32 %v374, 0.0
        %v425 = vmax.f32 %v393, 0.0
        %v426 = vmax.f32 %v412, 0.0
        %v427 = vmax.f32 %v358, 0.0
        %v428 = vmax.f32 %v377, 0.0
        %v429 = vmax.f32 %v396, 0.0
        %v430 = vmax.f32 %v415, 0.0
        %v431 = vmax.f32 %v360, 0.0
        %v432 = vmax.f32 %v379, 0.0
        %v433 = vmax.f32 %v398, 0.0
        %v434 = vmax.f32 %v417, 0.0
        %v435 = vld [vmem:[%s2] sm:$0xf]
        %v436 = vld [vmem:[%s2 + $0x4] sm:$0xf]
        %v437 = vld [vmem:[%s2 + $0x8] sm:$0xf]
        %v438 = vld [vmem:[%s2 + $0xc] sm:$0xf]
        %v439 = vpack.c.bf16 %v423, %v419
        %v440 = vpack.c.bf16 %v424, %v420
        %v441 = vpack.c.bf16 %v425, %v421
        %v442 = vpack.c.bf16 %v426, %v422
        %v443 = vpack.c.bf16 %v431, %v427
        %v444 = vpack.c.bf16 %v432, %v428
        %v445 = vpack.c.bf16 %v433, %v429
        %v446 = vpack.c.bf16 %v434, %v430
        %v447 = vld [vmem:[%s3] sm:$0xff]
        %v448 = vld [vmem:[%s3 + $0x8] sm:$0xff]
        %v449 = vld [vmem:[%s3 + $0x10] sm:$0xff]
        %v450 = vld [vmem:[%s3 + $0x18] sm:$0xff]
        %452 = vset.pattern.permute.xlu0 0
        %453 = vperm.xlu0 %452, %v447
        %v454 = vpop.permute.xlu0 %453
        %457 = vset.pattern.permute.xlu0 0
        %458 = vperm.xlu0 %457, %v448
        %v459 = vpop.permute.xlu0 %458
        %462 = vset.pattern.permute.xlu0 0
        %463 = vperm.xlu0 %462, %v449
        %v464 = vpop.permute.xlu0 %463
        %467 = vset.pattern.permute.xlu0 0
        %468 = vperm.xlu0 %467, %v450
        %v469 = vpop.permute.xlu0 %468
        %v475 = vunpack.c.l.b16 %v435
        %v476 = vunpack.c.l.b16 %v436
        %v477 = vunpack.c.l.b16 %v437
        %v478 = vunpack.c.l.b16 %v438
        %v479 = vpack.c.b16 %v476, %v475
        %v480 = vpack.c.b16 %v478, %v477
        %vm481 = vcmask 261120
        %v483 = vsel %vm481, %v479, 0
        %v486 = vsel %vm481, %v480, 0
        %488 = vmatpush.bf16.msra.mxu0 0
        %489 = vmatpush.bf16.msra.mxu0 0
        %490 = vmatpush.bf16.msra.mxu0 0
        %491 = vmatpush.bf16.msra.mxu0 0
        %492 = vmatpush.bf16.msra.mxu0 0
        %493 = vmatpush.bf16.msra.mxu0 0
        %494 = vmatpush.bf16.msra.mxu0 %v443
        %495 = vmatpush.bf16.msra.mxu0 %v439
        %496 = vmatmul.bf16.gmra.mxu0 %v483
        %v497 = vpop.f32.mrf.mxu0
        %v498 = vadd.f32 %v454, %v497
        %v499 = vpop.f32.mrf.mxu0
        %v500 = vadd.f32 %v459, %v499
        %501 = vmatmul.bf16.gmra.mxu0 %v486
        %v502 = vpop.f32.mrf.mxu0
        %v503 = vadd.f32 %v464, %v502
        %v504 = vpop.f32.mrf.mxu0
        %v505 = vadd.f32 %v469, %v504
        %506 = vdwg.mxu0
        %507 = vmatpush.bf16.msra.mxu0 0
        %508 = vmatpush.bf16.msra.mxu0 0
        %509 = vmatpush.bf16.msra.mxu0 0
        %510 = vmatpush.bf16.msra.mxu0 0
        %511 = vmatpush.bf16.msra.mxu0 0
        %512 = vmatpush.bf16.msra.mxu0 0
        %513 = vmatpush.bf16.msra.mxu0 %v444
        %514 = vmatpush.bf16.msra.mxu0 %v440
        %515 = vmatmul.bf16.gmra.mxu0 %v483
        %v516 = vpop.f32.mrf.mxu0
        %v517 = vadd.f32 %v454, %v516
        %v518 = vpop.f32.mrf.mxu0
        %v519 = vadd.f32 %v459, %v518
        %520 = vmatmul.bf16.gmra.mxu0 %v486
        %v521 = vpop.f32.mrf.mxu0
        %v522 = vadd.f32 %v464, %v521
        %v523 = vpop.f32.mrf.mxu0
        %v524 = vadd.f32 %v469, %v523
        %525 = vdwg.mxu0
        %526 = vmatpush.bf16.msra.mxu0 0
        %527 = vmatpush.bf16.msra.mxu0 0
        %528 = vmatpush.bf16.msra.mxu0 0
        %529 = vmatpush.bf16.msra.mxu0 0
        %530 = vmatpush.bf16.msra.mxu0 0
        %531 = vmatpush.bf16.msra.mxu0 0
        %532 = vmatpush.bf16.msra.mxu0 %v445
        %533 = vmatpush.bf16.msra.mxu0 %v441
        %534 = vmatmul.bf16.gmra.mxu0 %v483
        %v535 = vpop.f32.mrf.mxu0
        %v536 = vadd.f32 %v454, %v535
        %v537 = vpop.f32.mrf.mxu0
        %v538 = vadd.f32 %v459, %v537
        %539 = vmatmul.bf16.gmra.mxu0 %v486
        %v540 = vpop.f32.mrf.mxu0
        %v541 = vadd.f32 %v464, %v540
        %v542 = vpop.f32.mrf.mxu0
        %v543 = vadd.f32 %v469, %v542
        %544 = vdwg.mxu0
        %545 = vmatpush.bf16.msra.mxu0 0
        %546 = vmatpush.bf16.msra.mxu0 0
        %547 = vmatpush.bf16.msra.mxu0 0
        %548 = vmatpush.bf16.msra.mxu0 0
        %549 = vmatpush.bf16.msra.mxu0 0
        %550 = vmatpush.bf16.msra.mxu0 0
        %551 = vmatpush.bf16.msra.mxu0 %v446
        %552 = vmatpush.bf16.msra.mxu0 %v442
        %553 = vmatmul.bf16.gmra.mxu0 %v483
        %v554 = vpop.f32.mrf.mxu0
        %v555 = vadd.f32 %v454, %v554
        %v556 = vpop.f32.mrf.mxu0
        %v557 = vadd.f32 %v459, %v556
        %558 = vmatmul.bf16.gmra.mxu0 %v486
        %v559 = vpop.f32.mrf.mxu0
        %v560 = vadd.f32 %v464, %v559
        %v561 = vpop.f32.mrf.mxu0
        %v562 = vadd.f32 %v469, %v561
        %563 = vdwg.mxu0
        %v564 = vmax.f32 %v498, 0.0
        %v565 = vmax.f32 %v517, 0.0
        %v566 = vmax.f32 %v536, 0.0
        %v567 = vmax.f32 %v555, 0.0
        %v568 = vmax.f32 %v500, 0.0
        %v569 = vmax.f32 %v519, 0.0
        %v570 = vmax.f32 %v538, 0.0
        %v571 = vmax.f32 %v557, 0.0
        %v572 = vmax.f32 %v503, 0.0
        %v573 = vmax.f32 %v522, 0.0
        %v574 = vmax.f32 %v541, 0.0
        %v575 = vmax.f32 %v560, 0.0
        %v576 = vmax.f32 %v505, 0.0
        %v577 = vmax.f32 %v524, 0.0
        %v578 = vmax.f32 %v543, 0.0
        %v579 = vmax.f32 %v562, 0.0
        %v580 = vld [vmem:[%s4] sm:$0xf]
        %v581 = vld [vmem:[%s4 + $0x4] sm:$0xf]
        %v582 = vld [vmem:[%s4 + $0x8] sm:$0xf]
        %v583 = vld [vmem:[%s4 + $0xc] sm:$0xf]
        %v584 = vld [vmem:[%s4 + $0x10] sm:$0xf]
        %v585 = vld [vmem:[%s4 + $0x14] sm:$0xf]
        %v586 = vld [vmem:[%s4 + $0x18] sm:$0xf]
        %v587 = vld [vmem:[%s4 + $0x1c] sm:$0xf]
        %v588 = vpack.c.bf16 %v568, %v564
        %v589 = vpack.c.bf16 %v569, %v565
        %v590 = vpack.c.bf16 %v570, %v566
        %v591 = vpack.c.bf16 %v571, %v567
        %v592 = vpack.c.bf16 %v576, %v572
        %v593 = vpack.c.bf16 %v577, %v573
        %v594 = vpack.c.bf16 %v578, %v574
        %v595 = vpack.c.bf16 %v579, %v575
        %v596 = vld [vmem:[%s5] sm:$0xff]
        %v597 = vld [vmem:[%s5 + $0x8] sm:$0xff]
        %v598 = vld [vmem:[%s5 + $0x10] sm:$0xff]
        %v599 = vld [vmem:[%s5 + $0x18] sm:$0xff]
        %v600 = vld [vmem:[%s5 + $0x20] sm:$0xff]
        %v601 = vld [vmem:[%s5 + $0x28] sm:$0xff]
        %v602 = vld [vmem:[%s5 + $0x30] sm:$0xff]
        %v603 = vld [vmem:[%s5 + $0x38] sm:$0xff]
        %605 = vset.pattern.permute.xlu0 0
        %606 = vperm.xlu0 %605, %v596
        %v607 = vpop.permute.xlu0 %606
        %610 = vset.pattern.permute.xlu0 0
        %611 = vperm.xlu0 %610, %v597
        %v612 = vpop.permute.xlu0 %611
        %615 = vset.pattern.permute.xlu0 0
        %616 = vperm.xlu0 %615, %v598
        %v617 = vpop.permute.xlu0 %616
        %620 = vset.pattern.permute.xlu0 0
        %621 = vperm.xlu0 %620, %v599
        %v622 = vpop.permute.xlu0 %621
        %625 = vset.pattern.permute.xlu0 0
        %626 = vperm.xlu0 %625, %v600
        %v627 = vpop.permute.xlu0 %626
        %630 = vset.pattern.permute.xlu0 0
        %631 = vperm.xlu0 %630, %v601
        %v632 = vpop.permute.xlu0 %631
        %635 = vset.pattern.permute.xlu0 0
        %636 = vperm.xlu0 %635, %v602
        %v637 = vpop.permute.xlu0 %636
        %640 = vset.pattern.permute.xlu0 0
        %641 = vperm.xlu0 %640, %v603
        %v642 = vpop.permute.xlu0 %641
        %v652 = vunpack.c.l.b16 %v580
        %v653 = vunpack.c.l.b16 %v581
        %v654 = vunpack.c.l.b16 %v582
        %v655 = vunpack.c.l.b16 %v583
        %v656 = vunpack.c.l.b16 %v584
        %v657 = vunpack.c.l.b16 %v585
        %v658 = vunpack.c.l.b16 %v586
        %v659 = vunpack.c.l.b16 %v587
        %v660 = vpack.c.b16 %v653, %v652
        %v661 = vpack.c.b16 %v655, %v654
        %v662 = vpack.c.b16 %v657, %v656
        %v663 = vpack.c.b16 %v659, %v658
        %v665 = vsel %vm481, %v660, 0
        %v668 = vsel %vm481, %v661, 0
        %v671 = vsel %vm481, %v662, 0
        %v674 = vsel %vm481, %v663, 0
        %676 = vmatpush.bf16.msra.mxu0 0
        %677 = vmatpush.bf16.msra.mxu0 0
        %678 = vmatpush.bf16.msra.mxu0 0
        %679 = vmatpush.bf16.msra.mxu0 0
        %680 = vmatpush.bf16.msra.mxu0 0
        %681 = vmatpush.bf16.msra.mxu0 0
        %682 = vmatpush.bf16.msra.mxu0 %v592
        %683 = vmatpush.bf16.msra.mxu0 %v588
        %684 = vmatmul.bf16.gmra.mxu0 %v665
        %v685 = vpop.f32.mrf.mxu0
        %v686 = vadd.f32 %v607, %v685
        %v687 = vpop.f32.mrf.mxu0
        %v688 = vadd.f32 %v612, %v687
        %689 = vmatmul.bf16.gmra.mxu0 %v668
        %v690 = vpop.f32.mrf.mxu0
        %v691 = vadd.f32 %v617, %v690
        %v692 = vpop.f32.mrf.mxu0
        %v693 = vadd.f32 %v622, %v692
        %694 = vmatmul.bf16.gmra.mxu0 %v671
        %v695 = vpop.f32.mrf.mxu0
        %v696 = vadd.f32 %v627, %v695
        %v697 = vpop.f32.mrf.mxu0
        %v698 = vadd.f32 %v632, %v697
        %699 = vmatmul.bf16.gmra.mxu0 %v674
        %v700 = vpop.f32.mrf.mxu0
        %v701 = vadd.f32 %v637, %v700
        %v702 = vpop.f32.mrf.mxu0
        %v703 = vadd.f32 %v642, %v702
        %704 = vdwg.mxu0
        %705 = vmatpush.bf16.msra.mxu0 0
        %706 = vmatpush.bf16.msra.mxu0 0
        %707 = vmatpush.bf16.msra.mxu0 0
        %708 = vmatpush.bf16.msra.mxu0 0
        %709 = vmatpush.bf16.msra.mxu0 0
        %710 = vmatpush.bf16.msra.mxu0 0
        %711 = vmatpush.bf16.msra.mxu0 %v593
        %712 = vmatpush.bf16.msra.mxu0 %v589
        %713 = vmatmul.bf16.gmra.mxu0 %v665
        %v714 = vpop.f32.mrf.mxu0
        %v715 = vadd.f32 %v607, %v714
        %v716 = vpop.f32.mrf.mxu0
        %v717 = vadd.f32 %v612, %v716
        %718 = vmatmul.bf16.gmra.mxu0 %v668
        %v719 = vpop.f32.mrf.mxu0
        %v720 = vadd.f32 %v617, %v719
        %v721 = vpop.f32.mrf.mxu0
        %v722 = vadd.f32 %v622, %v721
        %723 = vmatmul.bf16.gmra.mxu0 %v671
        %v724 = vpop.f32.mrf.mxu0
        %v725 = vadd.f32 %v627, %v724
        %v726 = vpop.f32.mrf.mxu0
        %v727 = vadd.f32 %v632, %v726
        %728 = vmatmul.bf16.gmra.mxu0 %v674
        %v729 = vpop.f32.mrf.mxu0
        %v730 = vadd.f32 %v637, %v729
        %v731 = vpop.f32.mrf.mxu0
        %v732 = vadd.f32 %v642, %v731
        %733 = vdwg.mxu0
        %734 = vmatpush.bf16.msra.mxu0 0
        %735 = vmatpush.bf16.msra.mxu0 0
        %736 = vmatpush.bf16.msra.mxu0 0
        %737 = vmatpush.bf16.msra.mxu0 0
        %738 = vmatpush.bf16.msra.mxu0 0
        %739 = vmatpush.bf16.msra.mxu0 0
        %740 = vmatpush.bf16.msra.mxu0 %v594
        %741 = vmatpush.bf16.msra.mxu0 %v590
        %742 = vmatmul.bf16.gmra.mxu0 %v665
        %v743 = vpop.f32.mrf.mxu0
        %v744 = vadd.f32 %v607, %v743
        %v745 = vpop.f32.mrf.mxu0
        %v746 = vadd.f32 %v612, %v745
        %747 = vmatmul.bf16.gmra.mxu0 %v668
        %v748 = vpop.f32.mrf.mxu0
        %v749 = vadd.f32 %v617, %v748
        %v750 = vpop.f32.mrf.mxu0
        %v751 = vadd.f32 %v622, %v750
        %752 = vmatmul.bf16.gmra.mxu0 %v671
        %v753 = vpop.f32.mrf.mxu0
        %v754 = vadd.f32 %v627, %v753
        %v755 = vpop.f32.mrf.mxu0
        %v756 = vadd.f32 %v632, %v755
        %757 = vmatmul.bf16.gmra.mxu0 %v674
        %v758 = vpop.f32.mrf.mxu0
        %v759 = vadd.f32 %v637, %v758
        %v760 = vpop.f32.mrf.mxu0
        %v761 = vadd.f32 %v642, %v760
        %762 = vdwg.mxu0
        %763 = vmatpush.bf16.msra.mxu0 0
        %764 = vmatpush.bf16.msra.mxu0 0
        %765 = vmatpush.bf16.msra.mxu0 0
        %766 = vmatpush.bf16.msra.mxu0 0
        %767 = vmatpush.bf16.msra.mxu0 0
        %768 = vmatpush.bf16.msra.mxu0 0
        %769 = vmatpush.bf16.msra.mxu0 %v595
        %770 = vmatpush.bf16.msra.mxu0 %v591
        %771 = vmatmul.bf16.gmra.mxu0 %v665
        %v772 = vpop.f32.mrf.mxu0
        %v773 = vadd.f32 %v607, %v772
        %v774 = vpop.f32.mrf.mxu0
        %v775 = vadd.f32 %v612, %v774
        %776 = vmatmul.bf16.gmra.mxu0 %v668
        %v777 = vpop.f32.mrf.mxu0
        %v778 = vadd.f32 %v617, %v777
        %v779 = vpop.f32.mrf.mxu0
        %v780 = vadd.f32 %v622, %v779
        %781 = vmatmul.bf16.gmra.mxu0 %v671
        %v782 = vpop.f32.mrf.mxu0
        %v783 = vadd.f32 %v627, %v782
        %v784 = vpop.f32.mrf.mxu0
        %v785 = vadd.f32 %v632, %v784
        %786 = vmatmul.bf16.gmra.mxu0 %v674
        %v787 = vpop.f32.mrf.mxu0
        %v788 = vadd.f32 %v637, %v787
        %v789 = vpop.f32.mrf.mxu0
        %v790 = vadd.f32 %v642, %v789
        %791 = vdwg.mxu0
        %v792 = vxor.u32 %v686, 2147483648
        %v793 = vxor.u32 %v715, 2147483648
        %v794 = vxor.u32 %v744, 2147483648
        %v795 = vxor.u32 %v773, 2147483648
        %v796 = vxor.u32 %v688, 2147483648
        %v797 = vxor.u32 %v717, 2147483648
        %v798 = vxor.u32 %v746, 2147483648
        %v799 = vxor.u32 %v775, 2147483648
        %v800 = vxor.u32 %v691, 2147483648
        %v801 = vxor.u32 %v720, 2147483648
        %v802 = vxor.u32 %v749, 2147483648
        %v803 = vxor.u32 %v778, 2147483648
        %v804 = vxor.u32 %v693, 2147483648
        %v805 = vxor.u32 %v722, 2147483648
        %v806 = vxor.u32 %v751, 2147483648
        %v807 = vxor.u32 %v780, 2147483648
        %v808 = vxor.u32 %v696, 2147483648
        %v809 = vxor.u32 %v725, 2147483648
        %v810 = vxor.u32 %v754, 2147483648
        %v811 = vxor.u32 %v783, 2147483648
        %v812 = vxor.u32 %v698, 2147483648
        %v813 = vxor.u32 %v727, 2147483648
        %v814 = vxor.u32 %v756, 2147483648
        %v815 = vxor.u32 %v785, 2147483648
        %v816 = vxor.u32 %v701, 2147483648
        %v817 = vxor.u32 %v730, 2147483648
        %v818 = vxor.u32 %v759, 2147483648
        %v819 = vxor.u32 %v788, 2147483648
        %v820 = vxor.u32 %v703, 2147483648
        %v821 = vxor.u32 %v732, 2147483648
        %v822 = vxor.u32 %v761, 2147483648
        %v823 = vxor.u32 %v790, 2147483648
        %v824 = vmul.f32 %v792, 1.442695
        %v825 = vpow.pop %v824
        %v826 = vmul.f32 %v793, 1.442695
        %v827 = vpow.pop %v826
        %v828 = vmul.f32 %v794, 1.442695
        %v829 = vpow.pop %v828
        %v830 = vmul.f32 %v795, 1.442695
        %v831 = vpow.pop %v830
        %v832 = vmul.f32 %v796, 1.442695
        %v833 = vpow.pop %v832
        %v834 = vmul.f32 %v797, 1.442695
        %v835 = vpow.pop %v834
        %v836 = vmul.f32 %v798, 1.442695
        %v837 = vpow.pop %v836
        %v838 = vmul.f32 %v799, 1.442695
        %v839 = vpow.pop %v838
        %v840 = vmul.f32 %v800, 1.442695
        %v841 = vpow.pop %v840
        %v842 = vmul.f32 %v801, 1.442695
        %v843 = vpow.pop %v842
        %v844 = vmul.f32 %v802, 1.442695
        %v845 = vpow.pop %v844
        %v846 = vmul.f32 %v803, 1.442695
        %v847 = vpow.pop %v846
        %v848 = vmul.f32 %v804, 1.442695
        %v849 = vpow.pop %v848
        %v850 = vmul.f32 %v805, 1.442695
        %v851 = vpow.pop %v850
        %v852 = vmul.f32 %v806, 1.442695
        %v853 = vpow.pop %v852
        %v854 = vmul.f32 %v807, 1.442695
        %v855 = vpow.pop %v854
        %v856 = vmul.f32 %v808, 1.442695
        %v857 = vpow.pop %v856
        %v858 = vmul.f32 %v809, 1.442695
        %v859 = vpow.pop %v858
        %v860 = vmul.f32 %v810, 1.442695
        %v861 = vpow.pop %v860
        %v862 = vmul.f32 %v811, 1.442695
        %v863 = vpow.pop %v862
        %v864 = vmul.f32 %v812, 1.442695
        %v865 = vpow.pop %v864
        %v866 = vmul.f32 %v813, 1.442695
        %v867 = vpow.pop %v866
        %v868 = vmul.f32 %v814, 1.442695
        %v869 = vpow.pop %v868
        %v870 = vmul.f32 %v815, 1.442695
        %v871 = vpow.pop %v870
        %v872 = vmul.f32 %v816, 1.442695
        %v873 = vpow.pop %v872
        %v874 = vmul.f32 %v817, 1.442695
        %v875 = vpow.pop %v874
        %v876 = vmul.f32 %v818, 1.442695
        %v877 = vpow.pop %v876
        %v878 = vmul.f32 %v819, 1.442695
        %v879 = vpow.pop %v878
        %v880 = vmul.f32 %v820, 1.442695
        %v881 = vpow.pop %v880
        %v882 = vmul.f32 %v821, 1.442695
        %v883 = vpow.pop %v882
        %v884 = vmul.f32 %v822, 1.442695
        %v885 = vpow.pop %v884
        %v886 = vmul.f32 %v823, 1.442695
        %v887 = vpow.pop %v886
        %v888 = vadd.f32 %v825, 1.0
        %v889 = vadd.f32 %v827, 1.0
        %v890 = vadd.f32 %v829, 1.0
        %v891 = vadd.f32 %v831, 1.0
        %v892 = vadd.f32 %v833, 1.0
        %v893 = vadd.f32 %v835, 1.0
        %v894 = vadd.f32 %v837, 1.0
        %v895 = vadd.f32 %v839, 1.0
        %v896 = vadd.f32 %v841, 1.0
        %v897 = vadd.f32 %v843, 1.0
        %v898 = vadd.f32 %v845, 1.0
        %v899 = vadd.f32 %v847, 1.0
        %v900 = vadd.f32 %v849, 1.0
        %v901 = vadd.f32 %v851, 1.0
        %v902 = vadd.f32 %v853, 1.0
        %v903 = vadd.f32 %v855, 1.0
        %v904 = vadd.f32 %v857, 1.0
        %v905 = vadd.f32 %v859, 1.0
        %v906 = vadd.f32 %v861, 1.0
        %v907 = vadd.f32 %v863, 1.0
        %v908 = vadd.f32 %v865, 1.0
        %v909 = vadd.f32 %v867, 1.0
        %v910 = vadd.f32 %v869, 1.0
        %v911 = vadd.f32 %v871, 1.0
        %v912 = vadd.f32 %v873, 1.0
        %v913 = vadd.f32 %v875, 1.0
        %v914 = vadd.f32 %v877, 1.0
        %v915 = vadd.f32 %v879, 1.0
        %v916 = vadd.f32 %v881, 1.0
        %v917 = vadd.f32 %v883, 1.0
        %v918 = vadd.f32 %v885, 1.0
        %v919 = vadd.f32 %v887, 1.0
        %v920 = vrcp.pop %v888
        %v921 = vmul.f32 %v888, %v920
        %v922 = vsub.f32 1.0, %v921
        %v923 = vmul.f32 %v920, %v922
        %v924 = vadd.f32 %v920, %v923
        %vm925 = vweird.f32 %v888
        %vm926 = vweird.f32 %v920
        %vm927 = vmor %vm925, %vm926
        %v928 = vsel %vm927, %v920, %v924
        %v929 = vand.u32 2147483647, %v888
        %vm930 = vcmp.eq.f32.partialorder %v929, 8.507059e+37
        %v931 = vand.u32 %v888, 2147483648
        %v932 = vor.u32 1.1754944e-38, %v931
        %v933 = vsel %vm930, %v932, %v928
        %v934 = vmul.f32 1.0, %v933
        %v935 = vrcp.pop %v889
        %v936 = vmul.f32 %v889, %v935
        %v937 = vsub.f32 1.0, %v936
        %v938 = vmul.f32 %v935, %v937
        %v939 = vadd.f32 %v935, %v938
        %vm940 = vweird.f32 %v889
        %vm941 = vweird.f32 %v935
        %vm942 = vmor %vm940, %vm941
        %v943 = vsel %vm942, %v935, %v939
        %v944 = vand.u32 2147483647, %v889
        %vm945 = vcmp.eq.f32.partialorder %v944, 8.507059e+37
        %v946 = vand.u32 %v889, 2147483648
        %v947 = vor.u32 1.1754944e-38, %v946
        %v948 = vsel %vm945, %v947, %v943
        %v949 = vmul.f32 1.0, %v948
        %v950 = vrcp.pop %v890
        %v951 = vmul.f32 %v890, %v950
        %v952 = vsub.f32 1.0, %v951
        %v953 = vmul.f32 %v950, %v952
        %v954 = vadd.f32 %v950, %v953
        %vm955 = vweird.f32 %v890
        %vm956 = vweird.f32 %v950
        %vm957 = vmor %vm955, %vm956
        %v958 = vsel %vm957, %v950, %v954
        %v959 = vand.u32 2147483647, %v890
        %vm960 = vcmp.eq.f32.partialorder %v959, 8.507059e+37
        %v961 = vand.u32 %v890, 2147483648
        %v962 = vor.u32 1.1754944e-38, %v961
        %v963 = vsel %vm960, %v962, %v958
        %v964 = vmul.f32 1.0, %v963
        %v965 = vrcp.pop %v891
        %v966 = vmul.f32 %v891, %v965
        %v967 = vsub.f32 1.0, %v966
        %v968 = vmul.f32 %v965, %v967
        %v969 = vadd.f32 %v965, %v968
        %vm970 = vweird.f32 %v891
        %vm971 = vweird.f32 %v965
        %vm972 = vmor %vm970, %vm971
        %v973 = vsel %vm972, %v965, %v969
        %v974 = vand.u32 2147483647, %v891
        %vm975 = vcmp.eq.f32.partialorder %v974, 8.507059e+37
        %v976 = vand.u32 %v891, 2147483648
        %v977 = vor.u32 1.1754944e-38, %v976
        %v978 = vsel %vm975, %v977, %v973
        %v979 = vmul.f32 1.0, %v978
        %v980 = vrcp.pop %v892
        %v981 = vmul.f32 %v892, %v980
        %v982 = vsub.f32 1.0, %v981
        %v983 = vmul.f32 %v980, %v982
        %v984 = vadd.f32 %v980, %v983
        %vm985 = vweird.f32 %v892
        %vm986 = vweird.f32 %v980
        %vm987 = vmor %vm985, %vm986
        %v988 = vsel %vm987, %v980, %v984
        %v989 = vand.u32 2147483647, %v892
        %vm990 = vcmp.eq.f32.partialorder %v989, 8.507059e+37
        %v991 = vand.u32 %v892, 2147483648
        %v992 = vor.u32 1.1754944e-38, %v991
        %v993 = vsel %vm990, %v992, %v988
        %v994 = vmul.f32 1.0, %v993
        %v995 = vrcp.pop %v893
        %v996 = vmul.f32 %v893, %v995
        %v997 = vsub.f32 1.0, %v996
        %v998 = vmul.f32 %v995, %v997
        %v999 = vadd.f32 %v995, %v998
        %vm1000 = vweird.f32 %v893
        %vm1001 = vweird.f32 %v995
        %vm1002 = vmor %vm1000, %vm1001
        %v1003 = vsel %vm1002, %v995, %v999
        %v1004 = vand.u32 2147483647, %v893
        %vm1005 = vcmp.eq.f32.partialorder %v1004, 8.507059e+37
        %v1006 = vand.u32 %v893, 2147483648
        %v1007 = vor.u32 1.1754944e-38, %v1006
        %v1008 = vsel %vm1005, %v1007, %v1003
        %v1009 = vmul.f32 1.0, %v1008
        %v1010 = vrcp.pop %v894
        %v1011 = vmul.f32 %v894, %v1010
        %v1012 = vsub.f32 1.0, %v1011
        %v1013 = vmul.f32 %v1010, %v1012
        %v1014 = vadd.f32 %v1010, %v1013
        %vm1015 = vweird.f32 %v894
        %vm1016 = vweird.f32 %v1010
        %vm1017 = vmor %vm1015, %vm1016
        %v1018 = vsel %vm1017, %v1010, %v1014
        %v1019 = vand.u32 2147483647, %v894
        %vm1020 = vcmp.eq.f32.partialorder %v1019, 8.507059e+37
        %v1021 = vand.u32 %v894, 2147483648
        %v1022 = vor.u32 1.1754944e-38, %v1021
        %v1023 = vsel %vm1020, %v1022, %v1018
        %v1024 = vmul.f32 1.0, %v1023
        %v1025 = vrcp.pop %v895
        %v1026 = vmul.f32 %v895, %v1025
        %v1027 = vsub.f32 1.0, %v1026
        %v1028 = vmul.f32 %v1025, %v1027
        %v1029 = vadd.f32 %v1025, %v1028
        %vm1030 = vweird.f32 %v895
        %vm1031 = vweird.f32 %v1025
        %vm1032 = vmor %vm1030, %vm1031
        %v1033 = vsel %vm1032, %v1025, %v1029
        %v1034 = vand.u32 2147483647, %v895
        %vm1035 = vcmp.eq.f32.partialorder %v1034, 8.507059e+37
        %v1036 = vand.u32 %v895, 2147483648
        %v1037 = vor.u32 1.1754944e-38, %v1036
        %v1038 = vsel %vm1035, %v1037, %v1033
        %v1039 = vmul.f32 1.0, %v1038
        %v1040 = vrcp.pop %v896
        %v1041 = vmul.f32 %v896, %v1040
        %v1042 = vsub.f32 1.0, %v1041
        %v1043 = vmul.f32 %v1040, %v1042
        %v1044 = vadd.f32 %v1040, %v1043
        %vm1045 = vweird.f32 %v896
        %vm1046 = vweird.f32 %v1040
        %vm1047 = vmor %vm1045, %vm1046
        %v1048 = vsel %vm1047, %v1040, %v1044
        %v1049 = vand.u32 2147483647, %v896
        %vm1050 = vcmp.eq.f32.partialorder %v1049, 8.507059e+37
        %v1051 = vand.u32 %v896, 2147483648
        %v1052 = vor.u32 1.1754944e-38, %v1051
        %v1053 = vsel %vm1050, %v1052, %v1048
        %v1054 = vmul.f32 1.0, %v1053
        %v1055 = vrcp.pop %v897
        %v1056 = vmul.f32 %v897, %v1055
        %v1057 = vsub.f32 1.0, %v1056
        %v1058 = vmul.f32 %v1055, %v1057
        %v1059 = vadd.f32 %v1055, %v1058
        %vm1060 = vweird.f32 %v897
        %vm1061 = vweird.f32 %v1055
        %vm1062 = vmor %vm1060, %vm1061
        %v1063 = vsel %vm1062, %v1055, %v1059
        %v1064 = vand.u32 2147483647, %v897
        %vm1065 = vcmp.eq.f32.partialorder %v1064, 8.507059e+37
        %v1066 = vand.u32 %v897, 2147483648
        %v1067 = vor.u32 1.1754944e-38, %v1066
        %v1068 = vsel %vm1065, %v1067, %v1063
        %v1069 = vmul.f32 1.0, %v1068
        %v1070 = vrcp.pop %v898
        %v1071 = vmul.f32 %v898, %v1070
        %v1072 = vsub.f32 1.0, %v1071
        %v1073 = vmul.f32 %v1070, %v1072
        %v1074 = vadd.f32 %v1070, %v1073
        %vm1075 = vweird.f32 %v898
        %vm1076 = vweird.f32 %v1070
        %vm1077 = vmor %vm1075, %vm1076
        %v1078 = vsel %vm1077, %v1070, %v1074
        %v1079 = vand.u32 2147483647, %v898
        %vm1080 = vcmp.eq.f32.partialorder %v1079, 8.507059e+37
        %v1081 = vand.u32 %v898, 2147483648
        %v1082 = vor.u32 1.1754944e-38, %v1081
        %v1083 = vsel %vm1080, %v1082, %v1078
        %v1084 = vmul.f32 1.0, %v1083
        %v1085 = vrcp.pop %v899
        %v1086 = vmul.f32 %v899, %v1085
        %v1087 = vsub.f32 1.0, %v1086
        %v1088 = vmul.f32 %v1085, %v1087
        %v1089 = vadd.f32 %v1085, %v1088
        %vm1090 = vweird.f32 %v899
        %vm1091 = vweird.f32 %v1085
        %vm1092 = vmor %vm1090, %vm1091
        %v1093 = vsel %vm1092, %v1085, %v1089
        %v1094 = vand.u32 2147483647, %v899
        %vm1095 = vcmp.eq.f32.partialorder %v1094, 8.507059e+37
        %v1096 = vand.u32 %v899, 2147483648
        %v1097 = vor.u32 1.1754944e-38, %v1096
        %v1098 = vsel %vm1095, %v1097, %v1093
        %v1099 = vmul.f32 1.0, %v1098
        %v1100 = vrcp.pop %v900
        %v1101 = vmul.f32 %v900, %v1100
        %v1102 = vsub.f32 1.0, %v1101
        %v1103 = vmul.f32 %v1100, %v1102
        %v1104 = vadd.f32 %v1100, %v1103
        %vm1105 = vweird.f32 %v900
        %vm1106 = vweird.f32 %v1100
        %vm1107 = vmor %vm1105, %vm1106
        %v1108 = vsel %vm1107, %v1100, %v1104
        %v1109 = vand.u32 2147483647, %v900
        %vm1110 = vcmp.eq.f32.partialorder %v1109, 8.507059e+37
        %v1111 = vand.u32 %v900, 2147483648
        %v1112 = vor.u32 1.1754944e-38, %v1111
        %v1113 = vsel %vm1110, %v1112, %v1108
        %v1114 = vmul.f32 1.0, %v1113
        %v1115 = vrcp.pop %v901
        %v1116 = vmul.f32 %v901, %v1115
        %v1117 = vsub.f32 1.0, %v1116
        %v1118 = vmul.f32 %v1115, %v1117
        %v1119 = vadd.f32 %v1115, %v1118
        %vm1120 = vweird.f32 %v901
        %vm1121 = vweird.f32 %v1115
        %vm1122 = vmor %vm1120, %vm1121
        %v1123 = vsel %vm1122, %v1115, %v1119
        %v1124 = vand.u32 2147483647, %v901
        %vm1125 = vcmp.eq.f32.partialorder %v1124, 8.507059e+37
        %v1126 = vand.u32 %v901, 2147483648
        %v1127 = vor.u32 1.1754944e-38, %v1126
        %v1128 = vsel %vm1125, %v1127, %v1123
        %v1129 = vmul.f32 1.0, %v1128
        %v1130 = vrcp.pop %v902
        %v1131 = vmul.f32 %v902, %v1130
        %v1132 = vsub.f32 1.0, %v1131
        %v1133 = vmul.f32 %v1130, %v1132
        %v1134 = vadd.f32 %v1130, %v1133
        %vm1135 = vweird.f32 %v902
        %vm1136 = vweird.f32 %v1130
        %vm1137 = vmor %vm1135, %vm1136
        %v1138 = vsel %vm1137, %v1130, %v1134
        %v1139 = vand.u32 2147483647, %v902
        %vm1140 = vcmp.eq.f32.partialorder %v1139, 8.507059e+37
        %v1141 = vand.u32 %v902, 2147483648
        %v1142 = vor.u32 1.1754944e-38, %v1141
        %v1143 = vsel %vm1140, %v1142, %v1138
        %v1144 = vmul.f32 1.0, %v1143
        %v1145 = vrcp.pop %v903
        %v1146 = vmul.f32 %v903, %v1145
        %v1147 = vsub.f32 1.0, %v1146
        %v1148 = vmul.f32 %v1145, %v1147
        %v1149 = vadd.f32 %v1145, %v1148
        %vm1150 = vweird.f32 %v903
        %vm1151 = vweird.f32 %v1145
        %vm1152 = vmor %vm1150, %vm1151
        %v1153 = vsel %vm1152, %v1145, %v1149
        %v1154 = vand.u32 2147483647, %v903
        %vm1155 = vcmp.eq.f32.partialorder %v1154, 8.507059e+37
        %v1156 = vand.u32 %v903, 2147483648
        %v1157 = vor.u32 1.1754944e-38, %v1156
        %v1158 = vsel %vm1155, %v1157, %v1153
        %v1159 = vmul.f32 1.0, %v1158
        %v1160 = vrcp.pop %v904
        %v1161 = vmul.f32 %v904, %v1160
        %v1162 = vsub.f32 1.0, %v1161
        %v1163 = vmul.f32 %v1160, %v1162
        %v1164 = vadd.f32 %v1160, %v1163
        %vm1165 = vweird.f32 %v904
        %vm1166 = vweird.f32 %v1160
        %vm1167 = vmor %vm1165, %vm1166
        %v1168 = vsel %vm1167, %v1160, %v1164
        %v1169 = vand.u32 2147483647, %v904
        %vm1170 = vcmp.eq.f32.partialorder %v1169, 8.507059e+37
        %v1171 = vand.u32 %v904, 2147483648
        %v1172 = vor.u32 1.1754944e-38, %v1171
        %v1173 = vsel %vm1170, %v1172, %v1168
        %v1174 = vmul.f32 1.0, %v1173
        %v1175 = vrcp.pop %v905
        %v1176 = vmul.f32 %v905, %v1175
        %v1177 = vsub.f32 1.0, %v1176
        %v1178 = vmul.f32 %v1175, %v1177
        %v1179 = vadd.f32 %v1175, %v1178
        %vm1180 = vweird.f32 %v905
        %vm1181 = vweird.f32 %v1175
        %vm1182 = vmor %vm1180, %vm1181
        %v1183 = vsel %vm1182, %v1175, %v1179
        %v1184 = vand.u32 2147483647, %v905
        %vm1185 = vcmp.eq.f32.partialorder %v1184, 8.507059e+37
        %v1186 = vand.u32 %v905, 2147483648
        %v1187 = vor.u32 1.1754944e-38, %v1186
        %v1188 = vsel %vm1185, %v1187, %v1183
        %v1189 = vmul.f32 1.0, %v1188
        %v1190 = vrcp.pop %v906
        %v1191 = vmul.f32 %v906, %v1190
        %v1192 = vsub.f32 1.0, %v1191
        %v1193 = vmul.f32 %v1190, %v1192
        %v1194 = vadd.f32 %v1190, %v1193
        %vm1195 = vweird.f32 %v906
        %vm1196 = vweird.f32 %v1190
        %vm1197 = vmor %vm1195, %vm1196
        %v1198 = vsel %vm1197, %v1190, %v1194
        %v1199 = vand.u32 2147483647, %v906
        %vm1200 = vcmp.eq.f32.partialorder %v1199, 8.507059e+37
        %v1201 = vand.u32 %v906, 2147483648
        %v1202 = vor.u32 1.1754944e-38, %v1201
        %v1203 = vsel %vm1200, %v1202, %v1198
        %v1204 = vmul.f32 1.0, %v1203
        %v1205 = vrcp.pop %v907
        %v1206 = vmul.f32 %v907, %v1205
        %v1207 = vsub.f32 1.0, %v1206
        %v1208 = vmul.f32 %v1205, %v1207
        %v1209 = vadd.f32 %v1205, %v1208
        %vm1210 = vweird.f32 %v907
        %vm1211 = vweird.f32 %v1205
        %vm1212 = vmor %vm1210, %vm1211
        %v1213 = vsel %vm1212, %v1205, %v1209
        %v1214 = vand.u32 2147483647, %v907
        %vm1215 = vcmp.eq.f32.partialorder %v1214, 8.507059e+37
        %v1216 = vand.u32 %v907, 2147483648
        %v1217 = vor.u32 1.1754944e-38, %v1216
        %v1218 = vsel %vm1215, %v1217, %v1213
        %v1219 = vmul.f32 1.0, %v1218
        %v1220 = vrcp.pop %v908
        %v1221 = vmul.f32 %v908, %v1220
        %v1222 = vsub.f32 1.0, %v1221
        %v1223 = vmul.f32 %v1220, %v1222
        %v1224 = vadd.f32 %v1220, %v1223
        %vm1225 = vweird.f32 %v908
        %vm1226 = vweird.f32 %v1220
        %vm1227 = vmor %vm1225, %vm1226
        %v1228 = vsel %vm1227, %v1220, %v1224
        %v1229 = vand.u32 2147483647, %v908
        %vm1230 = vcmp.eq.f32.partialorder %v1229, 8.507059e+37
        %v1231 = vand.u32 %v908, 2147483648
        %v1232 = vor.u32 1.1754944e-38, %v1231
        %v1233 = vsel %vm1230, %v1232, %v1228
        %v1234 = vmul.f32 1.0, %v1233
        %v1235 = vrcp.pop %v909
        %v1236 = vmul.f32 %v909, %v1235
        %v1237 = vsub.f32 1.0, %v1236
        %v1238 = vmul.f32 %v1235, %v1237
        %v1239 = vadd.f32 %v1235, %v1238
        %vm1240 = vweird.f32 %v909
        %vm1241 = vweird.f32 %v1235
        %vm1242 = vmor %vm1240, %vm1241
        %v1243 = vsel %vm1242, %v1235, %v1239
        %v1244 = vand.u32 2147483647, %v909
        %vm1245 = vcmp.eq.f32.partialorder %v1244, 8.507059e+37
        %v1246 = vand.u32 %v909, 2147483648
        %v1247 = vor.u32 1.1754944e-38, %v1246
        %v1248 = vsel %vm1245, %v1247, %v1243
        %v1249 = vmul.f32 1.0, %v1248
        %v1250 = vrcp.pop %v910
        %v1251 = vmul.f32 %v910, %v1250
        %v1252 = vsub.f32 1.0, %v1251
        %v1253 = vmul.f32 %v1250, %v1252
        %v1254 = vadd.f32 %v1250, %v1253
        %vm1255 = vweird.f32 %v910
        %vm1256 = vweird.f32 %v1250
        %vm1257 = vmor %vm1255, %vm1256
        %v1258 = vsel %vm1257, %v1250, %v1254
        %v1259 = vand.u32 2147483647, %v910
        %vm1260 = vcmp.eq.f32.partialorder %v1259, 8.507059e+37
        %v1261 = vand.u32 %v910, 2147483648
        %v1262 = vor.u32 1.1754944e-38, %v1261
        %v1263 = vsel %vm1260, %v1262, %v1258
        %v1264 = vmul.f32 1.0, %v1263
        %v1265 = vrcp.pop %v911
        %v1266 = vmul.f32 %v911, %v1265
        %v1267 = vsub.f32 1.0, %v1266
        %v1268 = vmul.f32 %v1265, %v1267
        %v1269 = vadd.f32 %v1265, %v1268
        %vm1270 = vweird.f32 %v911
        %vm1271 = vweird.f32 %v1265
        %vm1272 = vmor %vm1270, %vm1271
        %v1273 = vsel %vm1272, %v1265, %v1269
        %v1274 = vand.u32 2147483647, %v911
        %vm1275 = vcmp.eq.f32.partialorder %v1274, 8.507059e+37
        %v1276 = vand.u32 %v911, 2147483648
        %v1277 = vor.u32 1.1754944e-38, %v1276
        %v1278 = vsel %vm1275, %v1277, %v1273
        %v1279 = vmul.f32 1.0, %v1278
        %v1280 = vrcp.pop %v912
        %v1281 = vmul.f32 %v912, %v1280
        %v1282 = vsub.f32 1.0, %v1281
        %v1283 = vmul.f32 %v1280, %v1282
        %v1284 = vadd.f32 %v1280, %v1283
        %vm1285 = vweird.f32 %v912
        %vm1286 = vweird.f32 %v1280
        %vm1287 = vmor %vm1285, %vm1286
        %v1288 = vsel %vm1287, %v1280, %v1284
        %v1289 = vand.u32 2147483647, %v912
        %vm1290 = vcmp.eq.f32.partialorder %v1289, 8.507059e+37
        %v1291 = vand.u32 %v912, 2147483648
        %v1292 = vor.u32 1.1754944e-38, %v1291
        %v1293 = vsel %vm1290, %v1292, %v1288
        %v1294 = vmul.f32 1.0, %v1293
        %v1295 = vrcp.pop %v913
        %v1296 = vmul.f32 %v913, %v1295
        %v1297 = vsub.f32 1.0, %v1296
        %v1298 = vmul.f32 %v1295, %v1297
        %v1299 = vadd.f32 %v1295, %v1298
        %vm1300 = vweird.f32 %v913
        %vm1301 = vweird.f32 %v1295
        %vm1302 = vmor %vm1300, %vm1301
        %v1303 = vsel %vm1302, %v1295, %v1299
        %v1304 = vand.u32 2147483647, %v913
        %vm1305 = vcmp.eq.f32.partialorder %v1304, 8.507059e+37
        %v1306 = vand.u32 %v913, 2147483648
        %v1307 = vor.u32 1.1754944e-38, %v1306
        %v1308 = vsel %vm1305, %v1307, %v1303
        %v1309 = vmul.f32 1.0, %v1308
        %v1310 = vrcp.pop %v914
        %v1311 = vmul.f32 %v914, %v1310
        %v1312 = vsub.f32 1.0, %v1311
        %v1313 = vmul.f32 %v1310, %v1312
        %v1314 = vadd.f32 %v1310, %v1313
        %vm1315 = vweird.f32 %v914
        %vm1316 = vweird.f32 %v1310
        %vm1317 = vmor %vm1315, %vm1316
        %v1318 = vsel %vm1317, %v1310, %v1314
        %v1319 = vand.u32 2147483647, %v914
        %vm1320 = vcmp.eq.f32.partialorder %v1319, 8.507059e+37
        %v1321 = vand.u32 %v914, 2147483648
        %v1322 = vor.u32 1.1754944e-38, %v1321
        %v1323 = vsel %vm1320, %v1322, %v1318
        %v1324 = vmul.f32 1.0, %v1323
        %v1325 = vrcp.pop %v915
        %v1326 = vmul.f32 %v915, %v1325
        %v1327 = vsub.f32 1.0, %v1326
        %v1328 = vmul.f32 %v1325, %v1327
        %v1329 = vadd.f32 %v1325, %v1328
        %vm1330 = vweird.f32 %v915
        %vm1331 = vweird.f32 %v1325
        %vm1332 = vmor %vm1330, %vm1331
        %v1333 = vsel %vm1332, %v1325, %v1329
        %v1334 = vand.u32 2147483647, %v915
        %vm1335 = vcmp.eq.f32.partialorder %v1334, 8.507059e+37
        %v1336 = vand.u32 %v915, 2147483648
        %v1337 = vor.u32 1.1754944e-38, %v1336
        %v1338 = vsel %vm1335, %v1337, %v1333
        %v1339 = vmul.f32 1.0, %v1338
        %v1340 = vrcp.pop %v916
        %v1341 = vmul.f32 %v916, %v1340
        %v1342 = vsub.f32 1.0, %v1341
        %v1343 = vmul.f32 %v1340, %v1342
        %v1344 = vadd.f32 %v1340, %v1343
        %vm1345 = vweird.f32 %v916
        %vm1346 = vweird.f32 %v1340
        %vm1347 = vmor %vm1345, %vm1346
        %v1348 = vsel %vm1347, %v1340, %v1344
        %v1349 = vand.u32 2147483647, %v916
        %vm1350 = vcmp.eq.f32.partialorder %v1349, 8.507059e+37
        %v1351 = vand.u32 %v916, 2147483648
        %v1352 = vor.u32 1.1754944e-38, %v1351
        %v1353 = vsel %vm1350, %v1352, %v1348
        %v1354 = vmul.f32 1.0, %v1353
        %v1355 = vrcp.pop %v917
        %v1356 = vmul.f32 %v917, %v1355
        %v1357 = vsub.f32 1.0, %v1356
        %v1358 = vmul.f32 %v1355, %v1357
        %v1359 = vadd.f32 %v1355, %v1358
        %vm1360 = vweird.f32 %v917
        %vm1361 = vweird.f32 %v1355
        %vm1362 = vmor %vm1360, %vm1361
        %v1363 = vsel %vm1362, %v1355, %v1359
        %v1364 = vand.u32 2147483647, %v917
        %vm1365 = vcmp.eq.f32.partialorder %v1364, 8.507059e+37
        %v1366 = vand.u32 %v917, 2147483648
        %v1367 = vor.u32 1.1754944e-38, %v1366
        %v1368 = vsel %vm1365, %v1367, %v1363
        %v1369 = vmul.f32 1.0, %v1368
        %v1370 = vrcp.pop %v918
        %v1371 = vmul.f32 %v918, %v1370
        %v1372 = vsub.f32 1.0, %v1371
        %v1373 = vmul.f32 %v1370, %v1372
        %v1374 = vadd.f32 %v1370, %v1373
        %vm1375 = vweird.f32 %v918
        %vm1376 = vweird.f32 %v1370
        %vm1377 = vmor %vm1375, %vm1376
        %v1378 = vsel %vm1377, %v1370, %v1374
        %v1379 = vand.u32 2147483647, %v918
        %vm1380 = vcmp.eq.f32.partialorder %v1379, 8.507059e+37
        %v1381 = vand.u32 %v918, 2147483648
        %v1382 = vor.u32 1.1754944e-38, %v1381
        %v1383 = vsel %vm1380, %v1382, %v1378
        %v1384 = vmul.f32 1.0, %v1383
        %v1385 = vrcp.pop %v919
        %v1386 = vmul.f32 %v919, %v1385
        %v1387 = vsub.f32 1.0, %v1386
        %v1388 = vmul.f32 %v1385, %v1387
        %v1389 = vadd.f32 %v1385, %v1388
        %vm1390 = vweird.f32 %v919
        %vm1391 = vweird.f32 %v1385
        %vm1392 = vmor %vm1390, %vm1391
        %v1393 = vsel %vm1392, %v1385, %v1389
        %v1394 = vand.u32 2147483647, %v919
        %vm1395 = vcmp.eq.f32.partialorder %v1394, 8.507059e+37
        %v1396 = vand.u32 %v919, 2147483648
        %v1397 = vor.u32 1.1754944e-38, %v1396
        %v1398 = vsel %vm1395, %v1397, %v1393
        %v1399 = vmul.f32 1.0, %v1398
        %v1400 = vmul.f32 %v419, %v934
        %v1401 = vmul.f32 %v420, %v949
        %v1402 = vmul.f32 %v421, %v964
        %v1403 = vmul.f32 %v422, %v979
        %v1404 = vmul.f32 %v423, %v994
        %v1405 = vmul.f32 %v424, %v1009
        %v1406 = vmul.f32 %v425, %v1024
        %v1407 = vmul.f32 %v426, %v1039
        %v1408 = vmul.f32 %v427, %v1054
        %v1409 = vmul.f32 %v428, %v1069
        %v1410 = vmul.f32 %v429, %v1084
        %v1411 = vmul.f32 %v430, %v1099
        %v1412 = vmul.f32 %v431, %v1114
        %v1413 = vmul.f32 %v432, %v1129
        %v1414 = vmul.f32 %v433, %v1144
        %v1415 = vmul.f32 %v434, %v1159
        %v1416 = vmul.f32 %v419, %v1174
        %v1417 = vmul.f32 %v420, %v1189
        %v1418 = vmul.f32 %v421, %v1204
        %v1419 = vmul.f32 %v422, %v1219
        %v1420 = vmul.f32 %v423, %v1234
        %v1421 = vmul.f32 %v424, %v1249
        %v1422 = vmul.f32 %v425, %v1264
        %v1423 = vmul.f32 %v426, %v1279
        %v1424 = vmul.f32 %v427, %v1294
        %v1425 = vmul.f32 %v428, %v1309
        %v1426 = vmul.f32 %v429, %v1324
        %v1427 = vmul.f32 %v430, %v1339
        %v1428 = vmul.f32 %v431, %v1354
        %v1429 = vmul.f32 %v432, %v1369
        %v1430 = vmul.f32 %v433, %v1384
        %v1431 = vmul.f32 %v434, %v1399
        %v1432 = vld [vmem:[%s6] sm:$0xf]
        %v1433 = vld [vmem:[%s6 + $0x4] sm:$0xf]
        %v1434 = vld [vmem:[%s6 + $0x8] sm:$0xf]
        %v1435 = vld [vmem:[%s6 + $0xc] sm:$0xf]
        %v1436 = vpack.c.bf16 %v1404, %v1400
        %v1437 = vpack.c.bf16 %v1405, %v1401
        %v1438 = vpack.c.bf16 %v1406, %v1402
        %v1439 = vpack.c.bf16 %v1407, %v1403
        %v1440 = vpack.c.bf16 %v1412, %v1408
        %v1441 = vpack.c.bf16 %v1413, %v1409
        %v1442 = vpack.c.bf16 %v1414, %v1410
        %v1443 = vpack.c.bf16 %v1415, %v1411
        %v1444 = vpack.c.bf16 %v1420, %v1416
        %v1445 = vpack.c.bf16 %v1421, %v1417
        %v1446 = vpack.c.bf16 %v1422, %v1418
        %v1447 = vpack.c.bf16 %v1423, %v1419
        %v1448 = vpack.c.bf16 %v1428, %v1424
        %v1449 = vpack.c.bf16 %v1429, %v1425
        %v1450 = vpack.c.bf16 %v1430, %v1426
        %v1451 = vpack.c.bf16 %v1431, %v1427
        %v1456 = vunpack.c.l.b16 %v1432
        %v1457 = vunpack.c.l.b16 %v1433
        %v1458 = vunpack.c.l.b16 %v1434
        %v1459 = vunpack.c.l.b16 %v1435
        %v1460 = vpack.c.b16 %v1457, %v1456
        %v1461 = vpack.c.b16 %v1459, %v1458
        %vm1462 = vcmask 523264
        %v1464 = vsel %vm1462, %v1460, 0
        %v1467 = vsel %vm1462, %v1461, 0
        %1469 = vmatpush.bf16.msra.mxu0 0
        %1470 = vmatpush.bf16.msra.mxu0 0
        %1471 = vmatpush.bf16.msra.mxu0 0
        %1472 = vmatpush.bf16.msra.mxu0 0
        %1473 = vmatpush.bf16.msra.mxu0 %v1448
        %1474 = vmatpush.bf16.msra.mxu0 %v1444
        %1475 = vmatpush.bf16.msra.mxu0 %v1440
        %1476 = vmatpush.bf16.msra.mxu0 %v1436
        %1477 = vmatmul.bf16.gmra.mxu0 %v1464
        %v1478 = vpop.f32.mrf.mxu0
        %v1479 = vadd.f32 0.0, %v1478
        %v1480 = vpop.f32.mrf.mxu0
        %v1481 = vadd.f32 0.0, %v1480
        %1482 = vmatmul.bf16.gmra.mxu0 %v1467
        %v1483 = vpop.f32.mrf.mxu0
        %v1484 = vadd.f32 0.0, %v1483
        %v1485 = vpop.f32.mrf.mxu0
        %v1486 = vadd.f32 0.0, %v1485
        %1487 = vdwg.mxu0
        %1488 = vmatpush.bf16.msra.mxu0 0
        %1489 = vmatpush.bf16.msra.mxu0 0
        %1490 = vmatpush.bf16.msra.mxu0 0
        %1491 = vmatpush.bf16.msra.mxu0 0
        %1492 = vmatpush.bf16.msra.mxu0 %v1449
        %1493 = vmatpush.bf16.msra.mxu0 %v1445
        %1494 = vmatpush.bf16.msra.mxu0 %v1441
        %1495 = vmatpush.bf16.msra.mxu0 %v1437
        %1496 = vmatmul.bf16.gmra.mxu0 %v1464
        %v1497 = vpop.f32.mrf.mxu0
        %v1498 = vadd.f32 0.0, %v1497
        %v1499 = vpop.f32.mrf.mxu0
        %v1500 = vadd.f32 0.0, %v1499
        %1501 = vmatmul.bf16.gmra.mxu0 %v1467
        %v1502 = vpop.f32.mrf.mxu0
        %v1503 = vadd.f32 0.0, %v1502
        %v1504 = vpop.f32.mrf.mxu0
        %v1505 = vadd.f32 0.0, %v1504
        %1506 = vdwg.mxu0
        %1507 = vmatpush.bf16.msra.mxu0 0
        %1508 = vmatpush.bf16.msra.mxu0 0
        %1509 = vmatpush.bf16.msra.mxu0 0
        %1510 = vmatpush.bf16.msra.mxu0 0
        %1511 = vmatpush.bf16.msra.mxu0 %v1450
        %1512 = vmatpush.bf16.msra.mxu0 %v1446
        %1513 = vmatpush.bf16.msra.mxu0 %v1442
        %1514 = vmatpush.bf16.msra.mxu0 %v1438
        %1515 = vmatmul.bf16.gmra.mxu0 %v1464
        %v1516 = vpop.f32.mrf.mxu0
        %v1517 = vadd.f32 0.0, %v1516
        %v1518 = vpop.f32.mrf.mxu0
        %v1519 = vadd.f32 0.0, %v1518
        %1520 = vmatmul.bf16.gmra.mxu0 %v1467
        %v1521 = vpop.f32.mrf.mxu0
        %v1522 = vadd.f32 0.0, %v1521
        %v1523 = vpop.f32.mrf.mxu0
        %v1524 = vadd.f32 0.0, %v1523
        %1525 = vdwg.mxu0
        %1526 = vmatpush.bf16.msra.mxu0 0
        %1527 = vmatpush.bf16.msra.mxu0 0
        %1528 = vmatpush.bf16.msra.mxu0 0
        %1529 = vmatpush.bf16.msra.mxu0 0
        %1530 = vmatpush.bf16.msra.mxu0 %v1451
        %1531 = vmatpush.bf16.msra.mxu0 %v1447
        %1532 = vmatpush.bf16.msra.mxu0 %v1443
        %1533 = vmatpush.bf16.msra.mxu0 %v1439
        %1534 = vmatmul.bf16.gmra.mxu0 %v1464
        %v1535 = vpop.f32.mrf.mxu0
        %v1536 = vadd.f32 0.0, %v1535
        %v1537 = vpop.f32.mrf.mxu0
        %v1538 = vadd.f32 0.0, %v1537
        %1539 = vmatmul.bf16.gmra.mxu0 %v1467
        %v1540 = vpop.f32.mrf.mxu0
        %v1541 = vadd.f32 0.0, %v1540
        %v1542 = vpop.f32.mrf.mxu0
        %v1543 = vadd.f32 0.0, %v1542
        %1544 = vdwg.mxu0
        %1545 = vst [vmem:[%s306] sm:$0xff] %v1479
        %1546 = vst [vmem:[%s306 + $0x8] sm:$0xff] %v1498
        %1547 = vst [vmem:[%s306 + $0x10] sm:$0xff] %v1517
        %1548 = vst [vmem:[%s306 + $0x18] sm:$0xff] %v1536
        %1549 = vst [vmem:[%s306 + $0x20] sm:$0xff] %v1481
        %1550 = vst [vmem:[%s306 + $0x28] sm:$0xff] %v1500
        %1551 = vst [vmem:[%s306 + $0x30] sm:$0xff] %v1519
        %1552 = vst [vmem:[%s306 + $0x38] sm:$0xff] %v1538
        %1553 = vst [vmem:[%s306 + $0x40] sm:$0xff] %v1484
        %1554 = vst [vmem:[%s306 + $0x48] sm:$0xff] %v1503
        %1555 = vst [vmem:[%s306 + $0x50] sm:$0xff] %v1522
        %1556 = vst [vmem:[%s306 + $0x58] sm:$0xff] %v1541
        %1557 = vst [vmem:[%s306 + $0x60] sm:$0xff] %v1486
        %1558 = vst [vmem:[%s306 + $0x68] sm:$0xff] %v1505
        %1559 = vst [vmem:[%s306 + $0x70] sm:$0xff] %v1524
        %1560 = vst [vmem:[%s306 + $0x78] sm:$0xff] %v1543
        %s1561 = sand.u32 %s178, 1
        %s1562 = sand.u32 %s178, 1
        %s1563 = smul.addr %s1562, 128
        %s1564 = scalar_lea.vmem [#allocation3], %s1563
        // Predicated region
        $region72: #{multichannel_sep.1} parent=66 // pred_check
          %p1565 = pneg %p188
        $region73: #{multichannel_sep.1} parent=66 // pred_check_branch
          %1567 = sbr.rel (%p1565) target = $region75
        $region74: #{multichannel_sep.1} parent=66 // pred_region
          %s1568 = smul.u32 4, %s18
          %s1569 = smul.addr %s1568, 8
          %s1570 = scalar_lea.vmem %s7, %s1569
          // Predicated region
          $region76: #{multichannel_sep.1} parent=74 // pred_check
            _
          $region77: #{multichannel_sep.1} parent=74 // pred_check_branch
            %1572 = sbr.rel (0) target = $region79
          $region78: #{multichannel_sep.1} parent=74 // pred_region
            // Predicated region
            $region80: #{multichannel_sep.1} parent=78 // pred_check
              _
            $region81: #{multichannel_sep.1} parent=78 // pred_check_branch
              %1574 = sbr.rel (0) target = $region83
            $region82: #{multichannel_sep.1} parent=78 // pred_region
              loop: start=0, step=1, limit=1
              $region84: #{multichannel_sep.1} parent=82 // loop_pre_header
                _
              $region85: #{multichannel_sep.1} parent=82 // loop_header
                %s1576 = sphi 0, %s1580
                %p1577 = scmp.ge.s32.totalorder %s1576, 1
                %s1581 = sphi %s1564, %s1564
                %s1582 = sphi %s1570, %s1570
              $region86: #{multichannel_sep.1} parent=82 // loop_header_branch
                %1579 = sbr.rel (%p1577) target = $region90
              $region87: #{multichannel_sep.1} parent=82 // loop_body
                %v1583 = vld [vmem:[%s1581] sm:$0xff]
                %1584 = vst [vmem:[%s1582] sm:$0xff] %v1583
                %v1585 = vld [vmem:[%s1581 + $0x8] sm:$0xff]
                %1586 = vst [vmem:[%s1582 + $0x8] sm:$0xff] %v1585
                %v1587 = vld [vmem:[%s1581 + $0x10] sm:$0xff]
                %1588 = vst [vmem:[%s1582 + $0x10] sm:$0xff] %v1587
                %v1589 = vld [vmem:[%s1581 + $0x18] sm:$0xff]
                %1590 = vst [vmem:[%s1582 + $0x18] sm:$0xff] %v1589
                %v1591 = vld [vmem:[%s1581 + $0x20] sm:$0xff]
                %1592 = vst [vmem:[%s1582 + $0x40] sm:$0xff] %v1591
                %v1593 = vld [vmem:[%s1581 + $0x28] sm:$0xff]
                %1594 = vst [vmem:[%s1582 + $0x48] sm:$0xff] %v1593
                %v1595 = vld [vmem:[%s1581 + $0x30] sm:$0xff]
                %1596 = vst [vmem:[%s1582 + $0x50] sm:$0xff] %v1595
                %v1597 = vld [vmem:[%s1581 + $0x38] sm:$0xff]
                %1598 = vst [vmem:[%s1582 + $0x58] sm:$0xff] %v1597
                %v1599 = vld [vmem:[%s1581 + $0x40] sm:$0xff]
                %1600 = vst [vmem:[%s1582 + $0x80] sm:$0xff] %v1599
                %v1601 = vld [vmem:[%s1581 + $0x48] sm:$0xff]
                %1602 = vst [vmem:[%s1582 + $0x88] sm:$0xff] %v1601
                %v1603 = vld [vmem:[%s1581 + $0x50] sm:$0xff]
                %1604 = vst [vmem:[%s1582 + $0x90] sm:$0xff] %v1603
                %v1605 = vld [vmem:[%s1581 + $0x58] sm:$0xff]
                %1606 = vst [vmem:[%s1582 + $0x98] sm:$0xff] %v1605
                %v1607 = vld [vmem:[%s1581 + $0x60] sm:$0xff]
                %1608 = vst [vmem:[%s1582 + $0xc0] sm:$0xff] %v1607
                %v1609 = vld [vmem:[%s1581 + $0x68] sm:$0xff]
                %1610 = vst [vmem:[%s1582 + $0xc8] sm:$0xff] %v1609
                %v1611 = vld [vmem:[%s1581 + $0x70] sm:$0xff]
                %1612 = vst [vmem:[%s1582 + $0xd0] sm:$0xff] %v1611
                %v1613 = vld [vmem:[%s1581 + $0x78] sm:$0xff]
                %1614 = vst [vmem:[%s1582 + $0xd8] sm:$0xff] %v1613
              $region88: #{multichannel_sep.1} parent=82 // loop_footer
                %s1580 = sadd.s32 1, %s1576
              $region89: #{multichannel_sep.1} parent=82 // loop_footer_branch
                %1575 = sbr.rel target = $region85
              $region90: #{multichannel_sep.1} parent=82 // loop_exit
                _
            $region83: #{multichannel_sep.1} parent=78 // pred_fallthru
              _
            // Predicated region
            $region91: #{multichannel_sep.1} parent=78 // pred_check
              _
            $region92: #{multichannel_sep.1} parent=78 // pred_check_branch
              %1616 = sbr.rel target = $region94
            $region93: #{multichannel_sep.1} parent=78 // pred_region
              _
            $region94: #{multichannel_sep.1} parent=78 // pred_fallthru
              _
          $region79: #{multichannel_sep.1} parent=74 // pred_fallthru
            _
          %1617 = vnop
        $region75: #{multichannel_sep.1} parent=66 // pred_fallthru
          _
      $region67: #{multichannel_sep.1} parent=5 // pred_fallthru
        _
      %p1618 = scmp.le.s32.totalorder 2, %s13
      // Predicated region
      $region95: #{multichannel_sep.1} parent=5 // pred_check
        %p1619 = pneg %p1618
      $region96: #{multichannel_sep.1} parent=5 // pred_check_branch
        %1621 = sbr.rel (%p1619) target = $region98
      $region97: #{multichannel_sep.1} parent=5 // pred_region
        %s1622 = ssub.s32 %s13, 2
        // Predicated region
        $region99: #{multichannel_sep.1} parent=97 // pred_check
          %p1623 = pneg %p194
        $region100: #{multichannel_sep.1} parent=97 // pred_check_branch
          %1625 = sbr.rel (%p1623) target = $region102
        $region101: #{multichannel_sep.1} parent=97 // pred_region
          %s1626 = sand.u32 %s179, 1
          %s1627 = sand.u32 %s179, 1
          %s1628 = smul.addr %s1627, 128
          %s1629 = scalar_lea.vmem [#allocation3], %s1628
        $region102: #{multichannel_sep.1} parent=97 // pred_fallthru
          _
      $region98: #{multichannel_sep.1} parent=5 // pred_fallthru
        _
    $region6: #{multichannel_sep.1} parent=1 // loop_footer
      %s17 = sadd.s32 1, %s13
    $region7: #{multichannel_sep.1} parent=1 // loop_footer_branch
      %12 = sbr.rel target = $region3
    $region8: #{multichannel_sep.1} parent=1 // loop_exit
      _

</llo_original>
